<compile_context>
chip_gen: v7x
topology: tpu7x:2x2x1
jax: 0.10.0
libtpu: 0.0.40
codegen_flags: <defaults>
</compile_context>

<pallas_src>
import functools

import jax
import jax.numpy as jnp
from jax import lax
from jax.experimental import pallas as pl
from jax.experimental.pallas import tpu as pltpu


_FULL_UNROLL_T_MAX = 16   # fully unroll the recurrence for T <= this


def _round_up(n, m):
    return ((n + m - 1) // m) * m


def _rnn_kernel(num_layers, matmul_dtype, x_ref, *rest):
    """Multi-layer Elman RNN (tanh) + final FC for one batch tile.

    rest = [w_ih_0, w_hh_0, b_0, ..., w_ih_{L-1}, w_hh_{L-1}, b_{L-1},
            w_fc, b_fc, out_ref, seq_a, seq_b]

    Shapes (already padded / tiled by the wrapper):
      x_ref   : (T, Bt, Ip)     time-major input tile (contiguous per step)
      w_ih_0  : (Ip, Hp)        w_ih_l (l>=1): (Hp, Hp)
      w_hh_l  : (Hp, Hp)
      b_l     : (1, Hp)         (= torch b_ih + b_hh)
      w_fc    : (Hp, Op),  b_fc: (1, Op)
      out_ref : (Bt, Op)
      seq_a/b : (T*Bt, Hp)      ping-pong sequence scratch
    """
    n_w = 3 * num_layers
    layer_params = [tuple(rest[3 * l:3 * l + 3]) for l in range(num_layers)]
    w_fc, b_fc = rest[n_w], rest[n_w + 1]
    out_ref = rest[n_w + 2]
    seq_scratch = (rest[n_w + 3], rest[n_w + 4])

    T, Bt, Ip = x_ref.shape

    def dotf(a, b):
        # f32 accumulation always; optionally narrow the operands (bf16) to cut
        # MXU passes / weight-push traffic.
        if matmul_dtype is not None:
            a = a.astype(matmul_dtype)
            b = b.astype(matmul_dtype)
        return jnp.dot(a, b, preferred_element_type=jnp.float32)

    full_unroll = T <= _FULL_UNROLL_T_MAX
    h_last = None

    for l, (w_ih, w_hh, b) in enumerate(layer_params):
        last_layer = l == num_layers - 1
        cur = seq_scratch[l % 2]        # this layer's output sequence
        prev = seq_scratch[(l + 1) % 2]  # previous layer's output sequence

        # ---- hoisted input projection: one (T*Bt, in) @ (in, Hp) MXU matmul
        # over all timesteps, outside the serial recurrence.
        if l == 0:
            src = x_ref[...].reshape(T * Bt, Ip)   # time-major, contiguous
        else:
            src = prev[...]                        # (T*Bt, Hp)
        xp = dotf(src, w_ih[...]) + b[...]         # (T*Bt, Hp), f32

        # ---- recurrence: only h @ W_hh -> add -> tanh on the critical path.
        w_hh_v = w_hh[...]                         # loaded once, reused T-1 times
        if full_unroll:
            # Small static T: fully unrolled; xp sliced statically, hidden
            # states stored to scratch only when a next layer will read them.
            h = jnp.tanh(xp[0:Bt])                 # h0 == 0  =>  skip h0 @ W_hh
            if not last_layer:
                cur[pl.ds(0, Bt), :] = h
            for t in range(1, T):
                h = jnp.tanh(xp[t * Bt:(t + 1) * Bt] + dotf(h, w_hh_v))
                if not last_layer:
                    cur[pl.ds(t * Bt, Bt), :] = h
        else:
            # Larger T: park xp in scratch and run a bounded-unroll loop that
            # overwrites each slot with the hidden state in place.
            cur[...] = xp
            h0 = jnp.tanh(xp[0:Bt])
            cur[pl.ds(0, Bt), :] = h0

            def body(t, h):
                off = pl.multiple_of(t * Bt, Bt)
                h = jnp.tanh(cur[pl.ds(off, Bt), :] + dotf(h, w_hh_v))
                cur[pl.ds(off, Bt), :] = h
                return h

            h = lax.fori_loop(1, T, body, h0, unroll=4)
        h_last = h

    # fc applied to the last timestep of the last layer (lane-dense store).
    out_ref[...] = (dotf(h_last, w_fc[...]) + b_fc[...]).astype(out_ref.dtype)


def rnn_forward(x, params, *, batch_tile=8, matmul_dtype=None):
    """x: (B, T, I) batch_first, like the PyTorch module. Returns (B, O)."""
    B, T, I = x.shape
    num_layers = len(params["w_ih"])
    H = params["w_hh"][0].shape[0]
    O = params["w_fc"].shape[1]

    # Tile-aligned sizes: lanes -> multiples of 128, sublanes -> 8.
    Bt = _round_up(max(batch_tile, 8), 8)        # per-program batch tile
    Bp = _round_up(max(B, Bt), Bt)
    Hp = _round_up(max(H, 128), 128)
    Ip = _round_up(max(I, 128), 128)
    Op = _round_up(max(O, 128), 128)

    f32 = jnp.float32
    # Time-major padded input (T, Bp, Ip): the transpose is a trivial XLA op on
    # a tiny array and makes every per-step slice in the kernel contiguous.
    x_tm = jnp.zeros((T, Bp, Ip), f32).at[:, :B, :I].set(
        jnp.transpose(x.astype(f32), (1, 0, 2)))

    inputs = [x_tm]
    in_specs = [pl.BlockSpec((T, Bt, Ip), lambda b: (0, b, 0))]
    for l in range(num_layers):
        in_f = I if l == 0 else H
        in_fp = Ip if l == 0 else Hp
        w_ih_p = jnp.zeros((in_fp, Hp), f32).at[:in_f, :H].set(params["w_ih"][l])
        w_hh_p = jnp.zeros((Hp, Hp), f32).at[:H, :H].set(params["w_hh"][l])
        b_p = jnp.zeros((1, Hp), f32).at[:, :H].set(params["b"][l])
        inputs += [w_ih_p, w_hh_p, b_p]
        in_specs += [
            pl.BlockSpec((in_fp, Hp), lambda b: (0, 0)),
            pl.BlockSpec((Hp, Hp), lambda b: (0, 0)),
            pl.BlockSpec((1, Hp), lambda b: (0, 0)),
        ]
    w_fc_p = jnp.zeros((Hp, Op), f32).at[:H, :O].set(params["w_fc"])
    b_fc_p = jnp.zeros((1, Op), f32).at[:, :O].set(params["b_fc"])
    inputs += [w_fc_p, b_fc_p]
    in_specs += [pl.BlockSpec((Hp, Op), lambda b: (0, 0)),
                 pl.BlockSpec((1, Op), lambda b: (0, 0))]

    kernel = functools.partial(_rnn_kernel, num_layers, matmul_dtype)
    out_p = pl.pallas_call(
        kernel,
        out_shape=jax.ShapeDtypeStruct((Bp, Op), f32),
        grid_spec=pltpu.PrefetchScalarGridSpec(
            num_scalar_prefetch=0,
            grid=(Bp // Bt,),
            in_specs=in_specs,
            out_specs=pl.BlockSpec((Bt, Op), lambda b: (b, 0)),
            scratch_shapes=[pltpu.VMEM((T * Bt, Hp), f32),
                            pltpu.VMEM((T * Bt, Hp), f32)],
        ),
        compiler_params=pltpu.CompilerParams(
            dimension_semantics=("parallel",)),
    )(*inputs)
    return out_p[:B, :O]


def init_params(key, input_size, hidden_size, num_layers, output_size):
    """Deterministic synthetic init (same U(-1/sqrt(H), 1/sqrt(H)) family as torch)."""
    bound = 1.0 / float(hidden_size) ** 0.5
    w_ih, w_hh, b = [], [], []
    for l in range(num_layers):
        in_f = input_size if l == 0 else hidden_size
        key, k1, k2, k3, k4 = jax.random.split(key, 5)
        w_ih.append(jax.random.uniform(k1, (in_f, hidden_size), jnp.float32, -bound, bound))
        w_hh.append(jax.random.uniform(k2, (hidden_size, hidden_size), jnp.float32, -bound, bound))
        b_ih = jax.random.uniform(k3, (1, hidden_size), jnp.float32, -bound, bound)
        b_hh = jax.random.uniform(k4, (1, hidden_size), jnp.float32, -bound, bound)
        b.append(b_ih + b_hh)   # same semantics as torch's separate b_ih + b_hh
    key, k5, k6 = jax.random.split(key, 3)
    fc_bound = 1.0 / float(hidden_size) ** 0.5
    w_fc = jax.random.uniform(k5, (hidden_size, output_size), jnp.float32, -fc_bound, fc_bound)
    b_fc = jax.random.uniform(k6, (1, output_size), jnp.float32, -fc_bound, fc_bound)
    return {"w_ih": w_ih, "w_hh": w_hh, "b": b, "w_fc": w_fc, "b_fc": b_fc}


def rnn_reference(x, params):
    """Pure-JAX reference matching nn.RNN(tanh, batch_first) + fc(out[:, -1, :])."""
    B, T, _ = x.shape
    H = params["w_hh"][0].shape[0]
    hi = jax.lax.Precision.HIGHEST
    seq = x
    for l in range(len(params["w_ih"])):
        h = jnp.zeros((B, H), jnp.float32)
        outs = []
        for t in range(T):
            h = jnp.tanh(jnp.dot(seq[:, t, :], params["w_ih"][l], precision=hi)
                         + jnp.dot(h, params["w_hh"][l], precision=hi)
                         + params["b"][l])
            outs.append(h)
        seq = jnp.stack(outs, axis=1)
    return jnp.dot(seq[:, -1, :], params["w_fc"], precision=hi) + params["b_fc"]


if __name__ == "__main__":
    # Config mirroring RNN(hidden_size=32, ansatz='rnn_2', data_label='lorenz'):
    #   input_size = output_size = 3, num_layers = 2
    hidden_size = 32
    num_layers = 2
    input_size = 3
    output_size = 3
    B, T = 2, 8

    key = jax.random.PRNGKey(0)
    kx, kp = jax.random.split(key)
    x = jax.random.normal(kx, (B, T, input_size), jnp.float32)
    params = init_params(kp, input_size, hidden_size, num_layers, output_size)

    out = rnn_forward(x, params)
    out = jax.block_until_ready(out)

    ref = rnn_reference(x, params)
    assert out.shape == (B, output_size)
    assert jnp.allclose(out, ref, atol=1e-5, rtol=1e-5), "Pallas kernel mismatch vs reference"

    print("KERNEL_OK")
</pallas_src>

<mosaic_0001>
module attributes {stable_mosaic.version = 11 : i64} {
  func.func @_rnn_kernel(%arg0: i32, %arg1: memref<8x8x128xf32, #tpu.memory_space<vmem>>, %arg2: memref<128x128xf32, #tpu.memory_space<vmem>>, %arg3: memref<128x128xf32, #tpu.memory_space<vmem>>, %arg4: memref<1x128xf32, #tpu.memory_space<vmem>>, %arg5: memref<128x128xf32, #tpu.memory_space<vmem>>, %arg6: memref<128x128xf32, #tpu.memory_space<vmem>>, %arg7: memref<1x128xf32, #tpu.memory_space<vmem>>, %arg8: memref<128x128xf32, #tpu.memory_space<vmem>>, %arg9: memref<1x128xf32, #tpu.memory_space<vmem>>, %arg10: memref<8x128xf32, #tpu.memory_space<vmem>>, %arg11: memref<64x128xf32, #tpu.memory_space<vmem>>, %arg12: memref<64x128xf32, #tpu.memory_space<vmem>>) attributes {dimension_semantics = [#tpu.dimension_semantics<parallel>], iteration_bounds = array<i64: 1>, scalar_prefetch = 0 : i64, scratch_operands = 2 : i64, tpu.core_type = #tpu.core_type<tc>, window_params = [{transform_indices = @transform_0, window_bounds = array<i64: 8, 8, 128>}, {pipeline_mode = #tpu.pipeline_mode<synchronous>, transform_indices = @transform_1, window_bounds = array<i64: 128, 128>}, {pipeline_mode = #tpu.pipeline_mode<synchronous>, transform_indices = @transform_2, window_bounds = array<i64: 128, 128>}, {pipeline_mode = #tpu.pipeline_mode<synchronous>, transform_indices = @transform_3, window_bounds = array<i64: 1, 128>}, {pipeline_mode = #tpu.pipeline_mode<synchronous>, transform_indices = @transform_4, window_bounds = array<i64: 128, 128>}, {pipeline_mode = #tpu.pipeline_mode<synchronous>, transform_indices = @transform_5, window_bounds = array<i64: 128, 128>}, {pipeline_mode = #tpu.pipeline_mode<synchronous>, transform_indices = @transform_6, window_bounds = array<i64: 1, 128>}, {pipeline_mode = #tpu.pipeline_mode<synchronous>, transform_indices = @transform_7, window_bounds = array<i64: 128, 128>}, {pipeline_mode = #tpu.pipeline_mode<synchronous>, transform_indices = @transform_8, window_bounds = array<i64: 1, 128>}, {transform_indices = @transform_9, window_bounds = array<i64: 8, 128>}]} {
    %c0 = arith.constant 0 : index
    %c0_0 = arith.constant 0 : index
    %c0_1 = arith.constant 0 : index
    %0 = vector.load %arg1[%c0, %c0_0, %c0_1] : memref<8x8x128xf32, #tpu.memory_space<vmem>>, vector<8x8x128xf32>
    %1 = vector.shape_cast %0 : vector<8x8x128xf32> to vector<64x128xf32>
    %c0_2 = arith.constant 0 : index
    %c0_3 = arith.constant 0 : index
    %2 = vector.load %arg2[%c0_2, %c0_3] : memref<128x128xf32, #tpu.memory_space<vmem>>, vector<128x128xf32>
    %cst = arith.constant dense<0.000000e+00> : vector<64x128xf32>
    %3 = tpu.matmul %1, %2, %cst {dimension_numbers = #tpu.dot_dimension_numbers<[1], [0], [0], [1], [0, 0, 1, 1], [], []>} : vector<64x128xf32>, vector<128x128xf32>, vector<64x128xf32> -> vector<64x128xf32>
    %c0_4 = arith.constant 0 : index
    %c0_5 = arith.constant 0 : index
    %4 = vector.load %arg4[%c0_4, %c0_5] : memref<1x128xf32, #tpu.memory_space<vmem>>, vector<1x128xf32>
    %5 = vector.broadcast %4 : vector<1x128xf32> to vector<64x128xf32>
    %6 = arith.addf %3, %5 : vector<64x128xf32>
    %c0_6 = arith.constant 0 : index
    %c0_7 = arith.constant 0 : index
    %7 = vector.load %arg3[%c0_6, %c0_7] : memref<128x128xf32, #tpu.memory_space<vmem>>, vector<128x128xf32>
    %8 = vector.extract_strided_slice %6 {offsets = [0, 0], sizes = [8, 128], strides = [1, 1]} : vector<64x128xf32> to vector<8x128xf32>
    %9 = math.tanh %8 : vector<8x128xf32>
    %c0_8 = arith.constant 0 : index
    %c0_9 = arith.constant 0 : index
    %10 = vector.load %arg11[%c0_8, %c0_9] : memref<64x128xf32, #tpu.memory_space<vmem>>, vector<8x128xf32>
    tpu.vector_store %arg11[%c0_8, %c0_9], %9 {strides = array<i32>} : memref<64x128xf32, #tpu.memory_space<vmem>>, vector<8x128xf32>,
    %11 = vector.extract_strided_slice %6 {offsets = [8, 0], sizes = [8, 128], strides = [1, 1]} : vector<64x128xf32> to vector<8x128xf32>
    %cst_10 = arith.constant dense<0.000000e+00> : vector<8x128xf32>
    %12 = tpu.matmul %9, %7, %cst_10 {dimension_numbers = #tpu.dot_dimension_numbers<[1], [0], [0], [1], [0, 0, 1, 1], [], []>} : vector<8x128xf32>, vector<128x128xf32>, vector<8x128xf32> -> vector<8x128xf32>
    %13 = arith.addf %11, %12 : vector<8x128xf32>
    %14 = math.tanh %13 : vector<8x128xf32>
    %c8 = arith.constant 8 : index
    %c0_11 = arith.constant 0 : index
    %15 = vector.load %arg11[%c8, %c0_11] : memref<64x128xf32, #tpu.memory_space<vmem>>, vector<8x128xf32>
    tpu.vector_store %arg11[%c8, %c0_11], %14 {strides = array<i32>} : memref<64x128xf32, #tpu.memory_space<vmem>>, vector<8x128xf32>,
    %16 = vector.extract_strided_slice %6 {offsets = [16, 0], sizes = [8, 128], strides = [1, 1]} : vector<64x128xf32> to vector<8x128xf32>
    %cst_12 = arith.constant dense<0.000000e+00> : vector<8x128xf32>
    %17 = tpu.matmul %14, %7, %cst_12 {dimension_numbers = #tpu.dot_dimension_numbers<[1], [0], [0], [1], [0, 0, 1, 1], [], []>} : vector<8x128xf32>, vector<128x128xf32>, vector<8x128xf32> -> vector<8x128xf32>
    %18 = arith.addf %16, %17 : vector<8x128xf32>
    %19 = math.tanh %18 : vector<8x128xf32>
    %c16 = arith.constant 16 : index
    %c0_13 = arith.constant 0 : index
    %20 = vector.load %arg11[%c16, %c0_13] : memref<64x128xf32, #tpu.memory_space<vmem>>, vector<8x128xf32>
    tpu.vector_store %arg11[%c16, %c0_13], %19 {strides = array<i32>} : memref<64x128xf32, #tpu.memory_space<vmem>>, vector<8x128xf32>,
    %21 = vector.extract_strided_slice %6 {offsets = [24, 0], sizes = [8, 128], strides = [1, 1]} : vector<64x128xf32> to vector<8x128xf32>
    %cst_14 = arith.constant dense<0.000000e+00> : vector<8x128xf32>
    %22 = tpu.matmul %19, %7, %cst_14 {dimension_numbers = #tpu.dot_dimension_numbers<[1], [0], [0], [1], [0, 0, 1, 1], [], []>} : vector<8x128xf32>, vector<128x128xf32>, vector<8x128xf32> -> vector<8x128xf32>
    %23 = arith.addf %21, %22 : vector<8x128xf32>
    %24 = math.tanh %23 : vector<8x128xf32>
    %c24 = arith.constant 24 : index
    %c0_15 = arith.constant 0 : index
    %25 = vector.load %arg11[%c24, %c0_15] : memref<64x128xf32, #tpu.memory_space<vmem>>, vector<8x128xf32>
    tpu.vector_store %arg11[%c24, %c0_15], %24 {strides = array<i32>} : memref<64x128xf32, #tpu.memory_space<vmem>>, vector<8x128xf32>,
    %26 = vector.extract_strided_slice %6 {offsets = [32, 0], sizes = [8, 128], strides = [1, 1]} : vector<64x128xf32> to vector<8x128xf32>
    %cst_16 = arith.constant dense<0.000000e+00> : vector<8x128xf32>
    %27 = tpu.matmul %24, %7, %cst_16 {dimension_numbers = #tpu.dot_dimension_numbers<[1], [0], [0], [1], [0, 0, 1, 1], [], []>} : vector<8x128xf32>, vector<128x128xf32>, vector<8x128xf32> -> vector<8x128xf32>
    %28 = arith.addf %26, %27 : vector<8x128xf32>
    %29 = math.tanh %28 : vector<8x128xf32>
    %c32 = arith.constant 32 : index
    %c0_17 = arith.constant 0 : index
    %30 = vector.load %arg11[%c32, %c0_17] : memref<64x128xf32, #tpu.memory_space<vmem>>, vector<8x128xf32>
    tpu.vector_store %arg11[%c32, %c0_17], %29 {strides = array<i32>} : memref<64x128xf32, #tpu.memory_space<vmem>>, vector<8x128xf32>,
    %31 = vector.extract_strided_slice %6 {offsets = [40, 0], sizes = [8, 128], strides = [1, 1]} : vector<64x128xf32> to vector<8x128xf32>
    %cst_18 = arith.constant dense<0.000000e+00> : vector<8x128xf32>
    %32 = tpu.matmul %29, %7, %cst_18 {dimension_numbers = #tpu.dot_dimension_numbers<[1], [0], [0], [1], [0, 0, 1, 1], [], []>} : vector<8x128xf32>, vector<128x128xf32>, vector<8x128xf32> -> vector<8x128xf32>
    %33 = arith.addf %31, %32 : vector<8x128xf32>
    %34 = math.tanh %33 : vector<8x128xf32>
    %c40 = arith.constant 40 : index
    %c0_19 = arith.constant 0 : index
    %35 = vector.load %arg11[%c40, %c0_19] : memref<64x128xf32, #tpu.memory_space<vmem>>, vector<8x128xf32>
    tpu.vector_store %arg11[%c40, %c0_19], %34 {strides = array<i32>} : memref<64x128xf32, #tpu.memory_space<vmem>>, vector<8x128xf32>,
    %36 = vector.extract_strided_slice %6 {offsets = [48, 0], sizes = [8, 128], strides = [1, 1]} : vector<64x128xf32> to vector<8x128xf32>
    %cst_20 = arith.constant dense<0.000000e+00> : vector<8x128xf32>
    %37 = tpu.matmul %34, %7, %cst_20 {dimension_numbers = #tpu.dot_dimension_numbers<[1], [0], [0], [1], [0, 0, 1, 1], [], []>} : vector<8x128xf32>, vector<128x128xf32>, vector<8x128xf32> -> vector<8x128xf32>
    %38 = arith.addf %36, %37 : vector<8x128xf32>
    %39 = math.tanh %38 : vector<8x128xf32>
    %c48 = arith.constant 48 : index
    %c0_21 = arith.constant 0 : index
    %40 = vector.load %arg11[%c48, %c0_21] : memref<64x128xf32, #tpu.memory_space<vmem>>, vector<8x128xf32>
    tpu.vector_store %arg11[%c48, %c0_21], %39 {strides = array<i32>} : memref<64x128xf32, #tpu.memory_space<vmem>>, vector<8x128xf32>,
    %41 = vector.extract_strided_slice %6 {offsets = [56, 0], sizes = [8, 128], strides = [1, 1]} : vector<64x128xf32> to vector<8x128xf32>
    %cst_22 = arith.constant dense<0.000000e+00> : vector<8x128xf32>
    %42 = tpu.matmul %39, %7, %cst_22 {dimension_numbers = #tpu.dot_dimension_numbers<[1], [0], [0], [1], [0, 0, 1, 1], [], []>} : vector<8x128xf32>, vector<128x128xf32>, vector<8x128xf32> -> vector<8x128xf32>
    %43 = arith.addf %41, %42 : vector<8x128xf32>
    %44 = math.tanh %43 : vector<8x128xf32>
    %c56 = arith.constant 56 : index
    %c0_23 = arith.constant 0 : index
    %45 = vector.load %arg11[%c56, %c0_23] : memref<64x128xf32, #tpu.memory_space<vmem>>, vector<8x128xf32>
    tpu.vector_store %arg11[%c56, %c0_23], %44 {strides = array<i32>} : memref<64x128xf32, #tpu.memory_space<vmem>>, vector<8x128xf32>,
    %c0_24 = arith.constant 0 : index
    %c0_25 = arith.constant 0 : index
    %46 = vector.load %arg11[%c0_24, %c0_25] : memref<64x128xf32, #tpu.memory_space<vmem>>, vector<64x128xf32>
    %c0_26 = arith.constant 0 : index
    %c0_27 = arith.constant 0 : index
    %47 = vector.load %arg5[%c0_26, %c0_27] : memref<128x128xf32, #tpu.memory_space<vmem>>, vector<128x128xf32>
    %cst_28 = arith.constant dense<0.000000e+00> : vector<64x128xf32>
    %48 = tpu.matmul %46, %47, %cst_28 {dimension_numbers = #tpu.dot_dimension_numbers<[1], [0], [0], [1], [0, 0, 1, 1], [], []>} : vector<64x128xf32>, vector<128x128xf32>, vector<64x128xf32> -> vector<64x128xf32>
    %c0_29 = arith.constant 0 : index
    %c0_30 = arith.constant 0 : index
    %49 = vector.load %arg7[%c0_29, %c0_30] : memref<1x128xf32, #tpu.memory_space<vmem>>, vector<1x128xf32>
    %50 = vector.broadcast %49 : vector<1x128xf32> to vector<64x128xf32>
    %51 = arith.addf %48, %50 : vector<64x128xf32>
    %c0_31 = arith.constant 0 : index
    %c0_32 = arith.constant 0 : index
    %52 = vector.load %arg6[%c0_31, %c0_32] : memref<128x128xf32, #tpu.memory_space<vmem>>, vector<128x128xf32>
    %53 = vector.extract_strided_slice %51 {offsets = [0, 0], sizes = [8, 128], strides = [1, 1]} : vector<64x128xf32> to vector<8x128xf32>
    %54 = math.tanh %53 : vector<8x128xf32>
    %55 = vector.extract_strided_slice %51 {offsets = [8, 0], sizes = [8, 128], strides = [1, 1]} : vector<64x128xf32> to vector<8x128xf32>
    %cst_33 = arith.constant dense<0.000000e+00> : vector<8x128xf32>
    %56 = tpu.matmul %54, %52, %cst_33 {dimension_numbers = #tpu.dot_dimension_numbers<[1], [0], [0], [1], [0, 0, 1, 1], [], []>} : vector<8x128xf32>, vector<128x128xf32>, vector<8x128xf32> -> vector<8x128xf32>
    %57 = arith.addf %55, %56 : vector<8x128xf32>
    %58 = math.tanh %57 : vector<8x128xf32>
    %59 = vector.extract_strided_slice %51 {offsets = [16, 0], sizes = [8, 128], strides = [1, 1]} : vector<64x128xf32> to vector<8x128xf32>
    %cst_34 = arith.constant dense<0.000000e+00> : vector<8x128xf32>
    %60 = tpu.matmul %58, %52, %cst_34 {dimension_numbers = #tpu.dot_dimension_numbers<[1], [0], [0], [1], [0, 0, 1, 1], [], []>} : vector<8x128xf32>, vector<128x128xf32>, vector<8x128xf32> -> vector<8x128xf32>
    %61 = arith.addf %59, %60 : vector<8x128xf32>
    %62 = math.tanh %61 : vector<8x128xf32>
    %63 = vector.extract_strided_slice %51 {offsets = [24, 0], sizes = [8, 128], strides = [1, 1]} : vector<64x128xf32> to vector<8x128xf32>
    %cst_35 = arith.constant dense<0.000000e+00> : vector<8x128xf32>
    %64 = tpu.matmul %62, %52, %cst_35 {dimension_numbers = #tpu.dot_dimension_numbers<[1], [0], [0], [1], [0, 0, 1, 1], [], []>} : vector<8x128xf32>, vector<128x128xf32>, vector<8x128xf32> -> vector<8x128xf32>
    %65 = arith.addf %63, %64 : vector<8x128xf32>
    %66 = math.tanh %65 : vector<8x128xf32>
    %67 = vector.extract_strided_slice %51 {offsets = [32, 0], sizes = [8, 128], strides = [1, 1]} : vector<64x128xf32> to vector<8x128xf32>
    %cst_36 = arith.constant dense<0.000000e+00> : vector<8x128xf32>
    %68 = tpu.matmul %66, %52, %cst_36 {dimension_numbers = #tpu.dot_dimension_numbers<[1], [0], [0], [1], [0, 0, 1, 1], [], []>} : vector<8x128xf32>, vector<128x128xf32>, vector<8x128xf32> -> vector<8x128xf32>
    %69 = arith.addf %67, %68 : vector<8x128xf32>
    %70 = math.tanh %69 : vector<8x128xf32>
    %71 = vector.extract_strided_slice %51 {offsets = [40, 0], sizes = [8, 128], strides = [1, 1]} : vector<64x128xf32> to vector<8x128xf32>
    %cst_37 = arith.constant dense<0.000000e+00> : vector<8x128xf32>
    %72 = tpu.matmul %70, %52, %cst_37 {dimension_numbers = #tpu.dot_dimension_numbers<[1], [0], [0], [1], [0, 0, 1, 1], [], []>} : vector<8x128xf32>, vector<128x128xf32>, vector<8x128xf32> -> vector<8x128xf32>
    %73 = arith.addf %71, %72 : vector<8x128xf32>
    %74 = math.tanh %73 : vector<8x128xf32>
    %75 = vector.extract_strided_slice %51 {offsets = [48, 0], sizes = [8, 128], strides = [1, 1]} : vector<64x128xf32> to vector<8x128xf32>
    %cst_38 = arith.constant dense<0.000000e+00> : vector<8x128xf32>
    %76 = tpu.matmul %74, %52, %cst_38 {dimension_numbers = #tpu.dot_dimension_numbers<[1], [0], [0], [1], [0, 0, 1, 1], [], []>} : vector<8x128xf32>, vector<128x128xf32>, vector<8x128xf32> -> vector<8x128xf32>
    %77 = arith.addf %75, %76 : vector<8x128xf32>
    %78 = math.tanh %77 : vector<8x128xf32>
    %79 = vector.extract_strided_slice %51 {offsets = [56, 0], sizes = [8, 128], strides = [1, 1]} : vector<64x128xf32> to vector<8x128xf32>
    %cst_39 = arith.constant dense<0.000000e+00> : vector<8x128xf32>
    %80 = tpu.matmul %78, %52, %cst_39 {dimension_numbers = #tpu.dot_dimension_numbers<[1], [0], [0], [1], [0, 0, 1, 1], [], []>} : vector<8x128xf32>, vector<128x128xf32>, vector<8x128xf32> -> vector<8x128xf32>
    %81 = arith.addf %79, %80 : vector<8x128xf32>
    %82 = math.tanh %81 : vector<8x128xf32>
    %c0_40 = arith.constant 0 : index
    %c0_41 = arith.constant 0 : index
    %83 = vector.load %arg8[%c0_40, %c0_41] : memref<128x128xf32, #tpu.memory_space<vmem>>, vector<128x128xf32>
    %cst_42 = arith.constant dense<0.000000e+00> : vector<8x128xf32>
    %84 = tpu.matmul %82, %83, %cst_42 {dimension_numbers = #tpu.dot_dimension_numbers<[1], [0], [0], [1], [0, 0, 1, 1], [], []>} : vector<8x128xf32>, vector<128x128xf32>, vector<8x128xf32> -> vector<8x128xf32>
    %c0_43 = arith.constant 0 : index
    %c0_44 = arith.constant 0 : index
    %85 = vector.load %arg9[%c0_43, %c0_44] : memref<1x128xf32, #tpu.memory_space<vmem>>, vector<1x128xf32>
    %86 = vector.broadcast %85 : vector<1x128xf32> to vector<8x128xf32>
    %87 = arith.addf %84, %86 : vector<8x128xf32>
    %c0_45 = arith.constant 0 : index
    %c0_46 = arith.constant 0 : index
    %88 = vector.load %arg10[%c0_45, %c0_46] : memref<8x128xf32, #tpu.memory_space<vmem>>, vector<8x128xf32>
    tpu.vector_store %arg10[%c0_45, %c0_46], %87 {strides = array<i32>} : memref<8x128xf32, #tpu.memory_space<vmem>>, vector<8x128xf32>,
    return
  }
  func.func @transform_0(%arg0: i32) -> (i32, i32, i32) {
    %c0_i32 = arith.constant 0 : i32
    %c0_i32_0 = arith.constant 0 : i32
    %c0_i32_1 = arith.constant 0 : i32
    return %c0_i32, %arg0, %c0_i32_0 : i32, i32, i32
  }
  func.func @transform_1(%arg0: i32) -> (i32, i32) {
    %c0_i32 = arith.constant 0 : i32
    %c0_i32_0 = arith.constant 0 : i32
    %c0_i32_1 = arith.constant 0 : i32
    return %c0_i32, %c0_i32_0 : i32, i32
  }
  func.func @transform_2(%arg0: i32) -> (i32, i32) {
    %c0_i32 = arith.constant 0 : i32
    %c0_i32_0 = arith.constant 0 : i32
    %c0_i32_1 = arith.constant 0 : i32
    return %c0_i32, %c0_i32_0 : i32, i32
  }
  func.func @transform_3(%arg0: i32) -> (i32, i32) {
    %c0_i32 = arith.constant 0 : i32
    %c0_i32_0 = arith.constant 0 : i32
    %c0_i32_1 = arith.constant 0 : i32
    return %c0_i32, %c0_i32_0 : i32, i32
  }
  func.func @transform_4(%arg0: i32) -> (i32, i32) {
    %c0_i32 = arith.constant 0 : i32
    %c0_i32_0 = arith.constant 0 : i32
    %c0_i32_1 = arith.constant 0 : i32
    return %c0_i32, %c0_i32_0 : i32, i32
  }
  func.func @transform_5(%arg0: i32) -> (i32, i32) {
    %c0_i32 = arith.constant 0 : i32
    %c0_i32_0 = arith.constant 0 : i32
    %c0_i32_1 = arith.constant 0 : i32
    return %c0_i32, %c0_i32_0 : i32, i32
  }
  func.func @transform_6(%arg0: i32) -> (i32, i32) {
    %c0_i32 = arith.constant 0 : i32
    %c0_i32_0 = arith.constant 0 : i32
    %c0_i32_1 = arith.constant 0 : i32
    return %c0_i32, %c0_i32_0 : i32, i32
  }
  func.func @transform_7(%arg0: i32) -> (i32, i32) {
    %c0_i32 = arith.constant 0 : i32
    %c0_i32_0 = arith.constant 0 : i32
    %c0_i32_1 = arith.constant 0 : i32
    return %c0_i32, %c0_i32_0 : i32, i32
  }
  func.func @transform_8(%arg0: i32) -> (i32, i32) {
    %c0_i32 = arith.constant 0 : i32
    %c0_i32_0 = arith.constant 0 : i32
    %c0_i32_1 = arith.constant 0 : i32
    return %c0_i32, %c0_i32_0 : i32, i32
  }
  func.func @transform_9(%arg0: i32) -> (i32, i32) {
    %c0_i32 = arith.constant 0 : i32
    %c0_i32_0 = arith.constant 0 : i32
    return %arg0, %c0_i32 : i32, i32
  }
}

</mosaic_0001>

<llo_original>
// kernel: tpu_custom_call.1
$region0: #{tpu_custom_call.1}
  #allocation0 [shape = 'u32[]', space=smem, size = 0x4, offset = 0x4, fixed_abs, tag = 'smem constant byte address 0x4 - core index']
  #allocation1 [shape = 'u32[144,128]{1,0:T(1,128)}', space=vmem, size = 0x12000, scoped, tag = 'internal scratch']
  #allocation2 [shape = 'f32[64,128]{1,0:T(8,128)}', space=vmem, size = 0x8000, scoped, tag = 'scratch operand']
  #allocation3 [shape = 'f32[64,128]{1,0:T(8,128)}', space=vmem, size = 0x8000, scoped, tag = 'scratch operand']
  %s0 = inlined_call_operand.hbm [shape: f32[8,8,128], index: 0, kind: input, shape index: {}]
  %s1 = inlined_call_operand.hbm [shape: f32[128,128], index: 1, kind: input, shape index: {}]
  %s2 = inlined_call_operand.hbm [shape: f32[128,128], index: 2, kind: input, shape index: {}]
  %s3 = inlined_call_operand.vmem [shape: f32[1,128], index: 3, kind: input, shape index: {}]
  %s4 = inlined_call_operand.hbm [shape: f32[128,128], index: 4, kind: input, shape index: {}]
  %s5 = inlined_call_operand.hbm [shape: f32[128,128], index: 5, kind: input, shape index: {}]
  %s6 = inlined_call_operand.vmem [shape: f32[1,128], index: 6, kind: input, shape index: {}]
  %s7 = inlined_call_operand.hbm [shape: f32[128,128], index: 7, kind: input, shape index: {}]
  %s8 = inlined_call_operand.vmem [shape: f32[1,128], index: 8, kind: input, shape index: {}]
  %s9 = inlined_call_operand.hbm [shape: f32[8,128], index: 9, kind: output, shape index: {}]
  %s10 = sld [smem:[#allocation0]]
  $region70: #{tpu_custom_call.1} parent=0
    _
  %s12 = ssub.s32 1, %s10
  %s13 = scalar_select 0, %s12, %s10
  $region1: #{tpu_custom_call.1} parent=0
    #allocation4 [shape = 'u8[32768]{0}', space=vmem, size = 0x8000, scoped, tag = 'input window, operand 0, single buffered']
    #allocation5 [shape = 's32[1]{0}', space=sflag, size = 0x4, scoped, tag = 'scoped memory for tpu_custom_call.1']
    #allocation6 [shape = 's32[1]{0}', space=sflag, size = 0x4, scoped, tag = 'scoped memory for tpu_custom_call.1']
    #allocation7 [shape = 'u8[65536]{0}', space=vmem, size = 0x10000, scoped, tag = 'input window, operand 1, single buffered']
    #allocation8 [shape = 's32[1]{0}', space=sflag, size = 0x4, scoped, tag = 'scoped memory for tpu_custom_call.1']
    #allocation9 [shape = 'u8[65536]{0}', space=vmem, size = 0x10000, scoped, tag = 'input window, operand 2, single buffered']
    #allocation10 [shape = 'u8[65536]{0}', space=vmem, size = 0x10000, scoped, tag = 'input window, operand 4, single buffered']
    #allocation11 [shape = 's32[1]{0}', space=sflag, size = 0x4, scoped, tag = 'scoped memory for tpu_custom_call.1']
    #allocation12 [shape = 'u8[65536]{0}', space=vmem, size = 0x10000, scoped, tag = 'input window, operand 5, single buffered']
    #allocation13 [shape = 'u8[65536]{0}', space=vmem, size = 0x10000, scoped, tag = 'input window, operand 7, single buffered']
    #allocation14 [shape = 's32[1]{0}', space=sflag, size = 0x4, scoped, tag = 'scoped memory for tpu_custom_call.1']
    #allocation15 [shape = 'u8[4096]{0}', space=vmem, size = 0x1000, scoped, tag = 'output window, operand 0, single buffered']
    %14 = vsyncpa [#allocation5], 0
    %15 = vsyncpa [#allocation8], 0
    %16 = vsyncpa [#allocation11], 0
    %17 = vsyncpa [#allocation14], 0
    %18 = vsyncpa [#allocation6], 0
    // Predicated region
    $region2: #{tpu_custom_call.1} parent=1 // pred_check
      _
    $region3: #{tpu_custom_call.1} parent=1 // pred_check_branch
      %20 = sbr.rel (0) target = $region5
    $region4: #{tpu_custom_call.1} parent=1 // pred_region
      %s22 = ssub.s32 1024, 1024
      %23 = vsyncadd [#allocation5], %s22
      %s24 = sshll.u32 [#allocation4], 4
      %s25 = int_to_ptr.vmem [resolvable:$true] %s24
      %30 = dma.hbm_to_vmem [thread:$0]  %s0, 1024, %s25, [#allocation5], 128, 128, 8
    $region5: #{tpu_custom_call.1} parent=1 // pred_fallthru
      _
    // Predicated region
    $region6: #{tpu_custom_call.1} parent=1 // pred_check
      _
    $region7: #{tpu_custom_call.1} parent=1 // pred_check_branch
      %32 = sbr.rel (0) target = $region9
    $region8: #{tpu_custom_call.1} parent=1 // pred_region
      %s34 = ssub.s32 2048, 2048
      %35 = vsyncadd [#allocation8], %s34
      %s36 = sshll.u32 [#allocation7], 4
      %s37 = int_to_ptr.vmem [resolvable:$true] %s36
      %42 = dma.hbm_to_vmem [thread:$0]  %s1, 2048, %s37, [#allocation8], 128, 128, 8
    $region9: #{tpu_custom_call.1} parent=1 // pred_fallthru
      _
    // Predicated region
    $region10: #{tpu_custom_call.1} parent=1 // pred_check
      _
    $region11: #{tpu_custom_call.1} parent=1 // pred_check_branch
      %44 = sbr.rel (0) target = $region13
    $region12: #{tpu_custom_call.1} parent=1 // pred_region
      %s46 = ssub.s32 2048, 2048
      %47 = vsyncadd [#allocation8], %s46
      %s48 = sshll.u32 [#allocation9], 4
      %s49 = int_to_ptr.vmem [resolvable:$true] %s48
      %54 = dma.hbm_to_vmem [thread:$0]  %s2, 2048, %s49, [#allocation8], 128, 128, 8
    $region13: #{tpu_custom_call.1} parent=1 // pred_fallthru
      _
    // Predicated region
    $region14: #{tpu_custom_call.1} parent=1 // pred_check
      _
    $region15: #{tpu_custom_call.1} parent=1 // pred_check_branch
      %56 = sbr.rel (0) target = $region17
    $region16: #{tpu_custom_call.1} parent=1 // pred_region
      _
    $region17: #{tpu_custom_call.1} parent=1 // pred_fallthru
      _
    // Predicated region
    $region18: #{tpu_custom_call.1} parent=1 // pred_check
      _
    $region19: #{tpu_custom_call.1} parent=1 // pred_check_branch
      %58 = sbr.rel (0) target = $region21
    $region20: #{tpu_custom_call.1} parent=1 // pred_region
      %s60 = ssub.s32 2048, 2048
      %61 = vsyncadd [#allocation11], %s60
      %s62 = sshll.u32 [#allocation10], 4
      %s63 = int_to_ptr.vmem [resolvable:$true] %s62
      %68 = dma.hbm_to_vmem [thread:$0]  %s4, 2048, %s63, [#allocation11], 128, 128, 8
    $region21: #{tpu_custom_call.1} parent=1 // pred_fallthru
      _
    // Predicated region
    $region22: #{tpu_custom_call.1} parent=1 // pred_check
      _
    $region23: #{tpu_custom_call.1} parent=1 // pred_check_branch
      %70 = sbr.rel (0) target = $region25
    $region24: #{tpu_custom_call.1} parent=1 // pred_region
      %s72 = ssub.s32 2048, 2048
      %73 = vsyncadd [#allocation11], %s72
      %s74 = sshll.u32 [#allocation12], 4
      %s75 = int_to_ptr.vmem [resolvable:$true] %s74
      %80 = dma.hbm_to_vmem [thread:$0]  %s5, 2048, %s75, [#allocation11], 128, 128, 8
    $region25: #{tpu_custom_call.1} parent=1 // pred_fallthru
      _
    // Predicated region
    $region26: #{tpu_custom_call.1} parent=1 // pred_check
      _
    $region27: #{tpu_custom_call.1} parent=1 // pred_check_branch
      %82 = sbr.rel (0) target = $region29
    $region28: #{tpu_custom_call.1} parent=1 // pred_region
      _
    $region29: #{tpu_custom_call.1} parent=1 // pred_fallthru
      _
    // Predicated region
    $region30: #{tpu_custom_call.1} parent=1 // pred_check
      _
    $region31: #{tpu_custom_call.1} parent=1 // pred_check_branch
      %84 = sbr.rel (0) target = $region33
    $region32: #{tpu_custom_call.1} parent=1 // pred_region
      %s86 = ssub.s32 2048, 2048
      %87 = vsyncadd [#allocation14], %s86
      %s88 = sshll.u32 [#allocation13], 4
      %s89 = int_to_ptr.vmem [resolvable:$true] %s88
      %94 = dma.hbm_to_vmem [thread:$0]  %s7, 2048, %s89, [#allocation14], 128, 128, 8
    $region33: #{tpu_custom_call.1} parent=1 // pred_fallthru
      _
    // Predicated region
    $region34: #{tpu_custom_call.1} parent=1 // pred_check
      _
    $region35: #{tpu_custom_call.1} parent=1 // pred_check_branch
      %96 = sbr.rel (0) target = $region37
    $region36: #{tpu_custom_call.1} parent=1 // pred_region
      _
    $region37: #{tpu_custom_call.1} parent=1 // pred_fallthru
      _
    // Predicated region
    $region38: #{tpu_custom_call.1} parent=1 // pred_check
      _
    $region39: #{tpu_custom_call.1} parent=1 // pred_check_branch
      %98 = sbr.rel (0) target = $region41
    $region40: #{tpu_custom_call.1} parent=1 // pred_region
      %99 = dma.done [#allocation5], 1024
    $region41: #{tpu_custom_call.1} parent=1 // pred_fallthru
      _
    // Predicated region
    $region42: #{tpu_custom_call.1} parent=1 // pred_check
      _
    $region43: #{tpu_custom_call.1} parent=1 // pred_check_branch
      %101 = sbr.rel (0) target = $region45
    $region44: #{tpu_custom_call.1} parent=1 // pred_region
      %102 = dma.done [#allocation8], 2048
    $region45: #{tpu_custom_call.1} parent=1 // pred_fallthru
      _
    // Predicated region
    $region46: #{tpu_custom_call.1} parent=1 // pred_check
      _
    $region47: #{tpu_custom_call.1} parent=1 // pred_check_branch
      %104 = sbr.rel (0) target = $region49
    $region48: #{tpu_custom_call.1} parent=1 // pred_region
      %105 = dma.done [#allocation8], 2048
    $region49: #{tpu_custom_call.1} parent=1 // pred_fallthru
      _
    // Predicated region
    $region50: #{tpu_custom_call.1} parent=1 // pred_check
      _
    $region51: #{tpu_custom_call.1} parent=1 // pred_check_branch
      %107 = sbr.rel (0) target = $region53
    $region52: #{tpu_custom_call.1} parent=1 // pred_region
      %108 = dma.done [#allocation11], 2048
    $region53: #{tpu_custom_call.1} parent=1 // pred_fallthru
      _
    // Predicated region
    $region54: #{tpu_custom_call.1} parent=1 // pred_check
      _
    $region55: #{tpu_custom_call.1} parent=1 // pred_check_branch
      %110 = sbr.rel (0) target = $region57
    $region56: #{tpu_custom_call.1} parent=1 // pred_region
      %111 = dma.done [#allocation11], 2048
    $region57: #{tpu_custom_call.1} parent=1 // pred_fallthru
      _
    // Predicated region
    $region58: #{tpu_custom_call.1} parent=1 // pred_check
      _
    $region59: #{tpu_custom_call.1} parent=1 // pred_check_branch
      %113 = sbr.rel (0) target = $region61
    $region60: #{tpu_custom_call.1} parent=1 // pred_region
      %114 = dma.done [#allocation14], 2048
    $region61: #{tpu_custom_call.1} parent=1 // pred_fallthru
      _
    %v115 = vld [vmem:[#allocation4] sm:$0xff]
    %v116 = vld [vmem:[#allocation4 + $0x8] sm:$0xff]
    %v117 = vld [vmem:[#allocation4 + $0x10] sm:$0xff]
    %v118 = vld [vmem:[#allocation4 + $0x18] sm:$0xff]
    %v119 = vld [vmem:[#allocation4 + $0x20] sm:$0xff]
    %v120 = vld [vmem:[#allocation4 + $0x28] sm:$0xff]
    %v121 = vld [vmem:[#allocation4 + $0x30] sm:$0xff]
    %v122 = vld [vmem:[#allocation4 + $0x38] sm:$0xff]
    %v123 = vld [vmem:[#allocation7] sm:$0xff]
    %v124 = vld [vmem:[#allocation7 + $0x8] sm:$0xff]
    %v125 = vld [vmem:[#allocation7 + $0x10] sm:$0xff]
    %v126 = vld [vmem:[#allocation7 + $0x18] sm:$0xff]
    %v127 = vld [vmem:[#allocation7 + $0x20] sm:$0xff]
    %v128 = vld [vmem:[#allocation7 + $0x28] sm:$0xff]
    %v129 = vld [vmem:[#allocation7 + $0x30] sm:$0xff]
    %v130 = vld [vmem:[#allocation7 + $0x38] sm:$0xff]
    %v131 = vld [vmem:[#allocation7 + $0x40] sm:$0xff]
    %v132 = vld [vmem:[#allocation7 + $0x48] sm:$0xff]
    %v133 = vld [vmem:[#allocation7 + $0x50] sm:$0xff]
    %v134 = vld [vmem:[#allocation7 + $0x58] sm:$0xff]
    %v135 = vld [vmem:[#allocation7 + $0x60] sm:$0xff]
    %v136 = vld [vmem:[#allocation7 + $0x68] sm:$0xff]
    %v137 = vld [vmem:[#allocation7 + $0x70] sm:$0xff]
    %v138 = vld [vmem:[#allocation7 + $0x78] sm:$0xff]
    %v139 = vld [vmem:[%s3] sm:$0x1]
    %v141 = vlaneseq
    %v142 = vshrl.u32 %v141, 7
    %v143 = vsub.s32 0, %v142
    %v144 = vrot.slane %v139, %v143
    %146 = vmatprep.subr.mxu0 0.0
    %147 = vmatpush1.msra.mxu0 %v123
    %148 = vmatprep.subr.mxu0 0.0
    %149 = vmatpush1.msra.mxu0 %v124
    %150 = vmatprep.subr.mxu0 0.0
    %151 = vmatpush1.msra.mxu0 %v125
    %152 = vmatprep.subr.mxu0 0.0
    %153 = vmatpush1.msra.mxu0 %v126
    %154 = vmatprep.subr.mxu0 0.0
    %155 = vmatpush1.msra.mxu0 %v127
    %156 = vmatprep.subr.mxu0 0.0
    %157 = vmatpush1.msra.mxu0 %v128
    %158 = vmatprep.subr.mxu0 0.0
    %159 = vmatpush1.msra.mxu0 %v129
    %160 = vmatprep.subr.mxu0 0.0
    %161 = vmatpush1.msra.mxu0 %v130
    %162 = vmatprep.subr.mxu0 0.0
    %163 = vmatpush1.msra.mxu0 %v131
    %164 = vmatprep.subr.mxu0 0.0
    %165 = vmatpush1.msra.mxu0 %v132
    %166 = vmatprep.subr.mxu0 0.0
    %167 = vmatpush1.msra.mxu0 %v133
    %168 = vmatprep.subr.mxu0 0.0
    %169 = vmatpush1.msra.mxu0 %v134
    %170 = vmatprep.subr.mxu0 0.0
    %171 = vmatpush1.msra.mxu0 %v135
    %172 = vmatprep.subr.mxu0 0.0
    %173 = vmatpush1.msra.mxu0 %v136
    %174 = vmatprep.subr.mxu0 0.0
    %175 = vmatpush1.msra.mxu0 %v137
    %176 = vmatprep.subr.mxu0 0.0
    %177 = vmatpush1.msra.mxu0 %v138
    %178 = vmatprep.subr.mxu0 0.0
    %179 = vmatpush1.msra.mxu0 0.0
    %180 = vmatprep.subr.mxu0 0.0
    %181 = vmatpush1.msra.mxu0 0.0
    %182 = vmatprep.subr.mxu0 0.0
    %183 = vmatpush1.msra.mxu0 0.0
    %184 = vmatprep.subr.mxu0 0.0
    %185 = vmatpush1.msra.mxu0 0.0
    %186 = vmatprep.subr.mxu0 0.0
    %187 = vmatpush1.msra.mxu0 0.0
    %188 = vmatprep.subr.mxu0 0.0
    %189 = vmatpush1.msra.mxu0 0.0
    %190 = vmatprep.subr.mxu0 0.0
    %191 = vmatpush1.msra.mxu0 0.0
    %192 = vmatprep.subr.mxu0 0.0
    %193 = vmatpush1.msra.mxu0 0.0
    %194 = vmatprep.subr.mxu0 0.0
    %195 = vmatpush1.msra.mxu0 0.0
    %196 = vmatprep.subr.mxu0 0.0
    %197 = vmatpush1.msra.mxu0 0.0
    %198 = vmatprep.subr.mxu0 0.0
    %199 = vmatpush1.msra.mxu0 0.0
    %200 = vmatprep.subr.mxu0 0.0
    %201 = vmatpush1.msra.mxu0 0.0
    %202 = vmatprep.subr.mxu0 0.0
    %203 = vmatpush1.msra.mxu0 0.0
    %204 = vmatprep.subr.mxu0 0.0
    %205 = vmatpush1.msra.mxu0 0.0
    %206 = vmatprep.subr.mxu0 0.0
    %207 = vmatpush1.msra.mxu0 0.0
    %208 = vmatprep.subr.mxu0 0.0
    %209 = vmatpush1.msra.mxu0 0.0
    %210 = vmatprep.mubr.f32.mxu0 0.0
    %211 = vmatmul.mubr.f32.gmra.mrb[0].mxu0 %v115
    %v212 = vpop.f32.mrb[0].mxu0
    %v213 = vadd.f32 %v144, %v212
    %v214 = vpop.f32.mrb[0].mxu0
    %215 = vmatprep.mubr.f32.mxu0 0.0
    %216 = vmatmul.mubr.f32.gmra.mrb[0].mxu0 %v116
    %v217 = vpop.f32.mrb[0].mxu0
    %v218 = vadd.f32 %v144, %v217
    %v219 = vpop.f32.mrb[0].mxu0
    %220 = vmatprep.mubr.f32.mxu0 0.0
    %221 = vmatmul.mubr.f32.gmra.mrb[0].mxu0 %v117
    %v222 = vpop.f32.mrb[0].mxu0
    %v223 = vadd.f32 %v144, %v222
    %v224 = vpop.f32.mrb[0].mxu0
    %225 = vmatprep.mubr.f32.mxu0 0.0
    %226 = vmatmul.mubr.f32.gmra.mrb[0].mxu0 %v118
    %v227 = vpop.f32.mrb[0].mxu0
    %v228 = vadd.f32 %v144, %v227
    %v229 = vpop.f32.mrb[0].mxu0
    %230 = vmatprep.mubr.f32.mxu0 0.0
    %231 = vmatmul.mubr.f32.gmra.mrb[0].mxu0 %v119
    %v232 = vpop.f32.mrb[0].mxu0
    %v233 = vadd.f32 %v144, %v232
    %v234 = vpop.f32.mrb[0].mxu0
    %235 = vmatprep.mubr.f32.mxu0 0.0
    %236 = vmatmul.mubr.f32.gmra.mrb[0].mxu0 %v120
    %v237 = vpop.f32.mrb[0].mxu0
    %v238 = vadd.f32 %v144, %v237
    %v239 = vpop.f32.mrb[0].mxu0
    %240 = vmatprep.mubr.f32.mxu0 0.0
    %241 = vmatmul.mubr.f32.gmra.mrb[0].mxu0 %v121
    %v242 = vpop.f32.mrb[0].mxu0
    %v243 = vadd.f32 %v144, %v242
    %v244 = vpop.f32.mrb[0].mxu0
    %245 = vmatprep.mubr.f32.mxu0 0.0
    %246 = vmatmul.mubr.f32.gmra.mrb[0].mxu0 %v122
    %v247 = vpop.f32.mrb[0].mxu0
    %v248 = vadd.f32 %v144, %v247
    %v249 = vpop.f32.mrb[0].mxu0
    %250 = vdwg.mxu0
    %v251 = vld [vmem:[#allocation9] sm:$0xff]
    %v252 = vld [vmem:[#allocation9 + $0x8] sm:$0xff]
    %v253 = vld [vmem:[#allocation9 + $0x10] sm:$0xff]
    %v254 = vld [vmem:[#allocation9 + $0x18] sm:$0xff]
    %v255 = vld [vmem:[#allocation9 + $0x20] sm:$0xff]
    %v256 = vld [vmem:[#allocation9 + $0x28] sm:$0xff]
    %v257 = vld [vmem:[#allocation9 + $0x30] sm:$0xff]
    %v258 = vld [vmem:[#allocation9 + $0x38] sm:$0xff]
    %v259 = vld [vmem:[#allocation9 + $0x40] sm:$0xff]
    %v260 = vld [vmem:[#allocation9 + $0x48] sm:$0xff]
    %v261 = vld [vmem:[#allocation9 + $0x50] sm:$0xff]
    %v262 = vld [vmem:[#allocation9 + $0x58] sm:$0xff]
    %v263 = vld [vmem:[#allocation9 + $0x60] sm:$0xff]
    %v264 = vld [vmem:[#allocation9 + $0x68] sm:$0xff]
    %v265 = vld [vmem:[#allocation9 + $0x70] sm:$0xff]
    %v266 = vld [vmem:[#allocation9 + $0x78] sm:$0xff]
    %v267 = vtanh.pop %v213
    %268 = vst [vmem:[#allocation2] sm:$0xff] %v267
    %269 = vmatprep.subr.mxu0 0.0
    %270 = vmatpush1.msra.mxu0 %v251
    %271 = vmatprep.subr.mxu0 0.0
    %272 = vmatpush1.msra.mxu0 %v252
    %273 = vmatprep.subr.mxu0 0.0
    %274 = vmatpush1.msra.mxu0 %v253
    %275 = vmatprep.subr.mxu0 0.0
    %276 = vmatpush1.msra.mxu0 %v254
    %277 = vmatprep.subr.mxu0 0.0
    %278 = vmatpush1.msra.mxu0 %v255
    %279 = vmatprep.subr.mxu0 0.0
    %280 = vmatpush1.msra.mxu0 %v256
    %281 = vmatprep.subr.mxu0 0.0
    %282 = vmatpush1.msra.mxu0 %v257
    %283 = vmatprep.subr.mxu0 0.0
    %284 = vmatpush1.msra.mxu0 %v258
    %285 = vmatprep.subr.mxu0 0.0
    %286 = vmatpush1.msra.mxu0 %v259
    %287 = vmatprep.subr.mxu0 0.0
    %288 = vmatpush1.msra.mxu0 %v260
    %289 = vmatprep.subr.mxu0 0.0
    %290 = vmatpush1.msra.mxu0 %v261
    %291 = vmatprep.subr.mxu0 0.0
    %292 = vmatpush1.msra.mxu0 %v262
    %293 = vmatprep.subr.mxu0 0.0
    %294 = vmatpush1.msra.mxu0 %v263
    %295 = vmatprep.subr.mxu0 0.0
    %296 = vmatpush1.msra.mxu0 %v264
    %297 = vmatprep.subr.mxu0 0.0
    %298 = vmatpush1.msra.mxu0 %v265
    %299 = vmatprep.subr.mxu0 0.0
    %300 = vmatpush1.msra.mxu0 %v266
    %301 = vmatprep.subr.mxu0 0.0
    %302 = vmatpush1.msra.mxu0 0.0
    %303 = vmatprep.subr.mxu0 0.0
    %304 = vmatpush1.msra.mxu0 0.0
    %305 = vmatprep.subr.mxu0 0.0
    %306 = vmatpush1.msra.mxu0 0.0
    %307 = vmatprep.subr.mxu0 0.0
    %308 = vmatpush1.msra.mxu0 0.0
    %309 = vmatprep.subr.mxu0 0.0
    %310 = vmatpush1.msra.mxu0 0.0
    %311 = vmatprep.subr.mxu0 0.0
    %312 = vmatpush1.msra.mxu0 0.0
    %313 = vmatprep.subr.mxu0 0.0
    %314 = vmatpush1.msra.mxu0 0.0
    %315 = vmatprep.subr.mxu0 0.0
    %316 = vmatpush1.msra.mxu0 0.0
    %317 = vmatprep.subr.mxu0 0.0
    %318 = vmatpush1.msra.mxu0 0.0
    %319 = vmatprep.subr.mxu0 0.0
    %320 = vmatpush1.msra.mxu0 0.0
    %321 = vmatprep.subr.mxu0 0.0
    %322 = vmatpush1.msra.mxu0 0.0
    %323 = vmatprep.subr.mxu0 0.0
    %324 = vmatpush1.msra.mxu0 0.0
    %325 = vmatprep.subr.mxu0 0.0
    %326 = vmatpush1.msra.mxu0 0.0
    %327 = vmatprep.subr.mxu0 0.0
    %328 = vmatpush1.msra.mxu0 0.0
    %329 = vmatprep.subr.mxu0 0.0
    %330 = vmatpush1.msra.mxu0 0.0
    %331 = vmatprep.subr.mxu0 0.0
    %332 = vmatpush1.msra.mxu0 0.0
    %333 = vmatprep.mubr.f32.mxu0 0.0
    %334 = vmatmul.mubr.f32.gmra.mrb[0].mxu0 %v267
    %v335 = vpop.f32.mrb[0].mxu0
    %v336 = vadd.f32 0.0, %v335
    %v337 = vpop.f32.mrb[0].mxu0
    %338 = vdwg.mxu0
    %v339 = vadd.f32 %v218, %v336
    %v340 = vtanh.pop %v339
    %341 = vst [vmem:[#allocation2 + $0x8] sm:$0xff] %v340
    %342 = vmatprep.subr.mxu0 0.0
    %343 = vmatpush1.msra.mxu0 %v251
    %344 = vmatprep.subr.mxu0 0.0
    %345 = vmatpush1.msra.mxu0 %v252
    %346 = vmatprep.subr.mxu0 0.0
    %347 = vmatpush1.msra.mxu0 %v253
    %348 = vmatprep.subr.mxu0 0.0
    %349 = vmatpush1.msra.mxu0 %v254
    %350 = vmatprep.subr.mxu0 0.0
    %351 = vmatpush1.msra.mxu0 %v255
    %352 = vmatprep.subr.mxu0 0.0
    %353 = vmatpush1.msra.mxu0 %v256
    %354 = vmatprep.subr.mxu0 0.0
    %355 = vmatpush1.msra.mxu0 %v257
    %356 = vmatprep.subr.mxu0 0.0
    %357 = vmatpush1.msra.mxu0 %v258
    %358 = vmatprep.subr.mxu0 0.0
    %359 = vmatpush1.msra.mxu0 %v259
    %360 = vmatprep.subr.mxu0 0.0
    %361 = vmatpush1.msra.mxu0 %v260
    %362 = vmatprep.subr.mxu0 0.0
    %363 = vmatpush1.msra.mxu0 %v261
    %364 = vmatprep.subr.mxu0 0.0
    %365 = vmatpush1.msra.mxu0 %v262
    %366 = vmatprep.subr.mxu0 0.0
    %367 = vmatpush1.msra.mxu0 %v263
    %368 = vmatprep.subr.mxu0 0.0
    %369 = vmatpush1.msra.mxu0 %v264
    %370 = vmatprep.subr.mxu0 0.0
    %371 = vmatpush1.msra.mxu0 %v265
    %372 = vmatprep.subr.mxu0 0.0
    %373 = vmatpush1.msra.mxu0 %v266
    %374 = vmatprep.subr.mxu0 0.0
    %375 = vmatpush1.msra.mxu0 0.0
    %376 = vmatprep.subr.mxu0 0.0
    %377 = vmatpush1.msra.mxu0 0.0
    %378 = vmatprep.subr.mxu0 0.0
    %379 = vmatpush1.msra.mxu0 0.0
    %380 = vmatprep.subr.mxu0 0.0
    %381 = vmatpush1.msra.mxu0 0.0
    %382 = vmatprep.subr.mxu0 0.0
    %383 = vmatpush1.msra.mxu0 0.0
    %384 = vmatprep.subr.mxu0 0.0
    %385 = vmatpush1.msra.mxu0 0.0
    %386 = vmatprep.subr.mxu0 0.0
    %387 = vmatpush1.msra.mxu0 0.0
    %388 = vmatprep.subr.mxu0 0.0
    %389 = vmatpush1.msra.mxu0 0.0
    %390 = vmatprep.subr.mxu0 0.0
    %391 = vmatpush1.msra.mxu0 0.0
    %392 = vmatprep.subr.mxu0 0.0
    %393 = vmatpush1.msra.mxu0 0.0
    %394 = vmatprep.subr.mxu0 0.0
    %395 = vmatpush1.msra.mxu0 0.0
    %396 = vmatprep.subr.mxu0 0.0
    %397 = vmatpush1.msra.mxu0 0.0
    %398 = vmatprep.subr.mxu0 0.0
    %399 = vmatpush1.msra.mxu0 0.0
    %400 = vmatprep.subr.mxu0 0.0
    %401 = vmatpush1.msra.mxu0 0.0
    %402 = vmatprep.subr.mxu0 0.0
    %403 = vmatpush1.msra.mxu0 0.0
    %404 = vmatprep.subr.mxu0 0.0
    %405 = vmatpush1.msra.mxu0 0.0
    %406 = vmatprep.mubr.f32.mxu0 0.0
    %407 = vmatmul.mubr.f32.gmra.mrb[0].mxu0 %v340
    %v408 = vpop.f32.mrb[0].mxu0
    %v409 = vadd.f32 0.0, %v408
    %v410 = vpop.f32.mrb[0].mxu0
    %411 = vdwg.mxu0
    %v412 = vadd.f32 %v223, %v409
    %v413 = vtanh.pop %v412
    %414 = vst [vmem:[#allocation2 + $0x10] sm:$0xff] %v413
    %415 = vmatprep.subr.mxu0 0.0
    %416 = vmatpush1.msra.mxu0 %v251
    %417 = vmatprep.subr.mxu0 0.0
    %418 = vmatpush1.msra.mxu0 %v252
    %419 = vmatprep.subr.mxu0 0.0
    %420 = vmatpush1.msra.mxu0 %v253
    %421 = vmatprep.subr.mxu0 0.0
    %422 = vmatpush1.msra.mxu0 %v254
    %423 = vmatprep.subr.mxu0 0.0
    %424 = vmatpush1.msra.mxu0 %v255
    %425 = vmatprep.subr.mxu0 0.0
    %426 = vmatpush1.msra.mxu0 %v256
    %427 = vmatprep.subr.mxu0 0.0
    %428 = vmatpush1.msra.mxu0 %v257
    %429 = vmatprep.subr.mxu0 0.0
    %430 = vmatpush1.msra.mxu0 %v258
    %431 = vmatprep.subr.mxu0 0.0
    %432 = vmatpush1.msra.mxu0 %v259
    %433 = vmatprep.subr.mxu0 0.0
    %434 = vmatpush1.msra.mxu0 %v260
    %435 = vmatprep.subr.mxu0 0.0
    %436 = vmatpush1.msra.mxu0 %v261
    %437 = vmatprep.subr.mxu0 0.0
    %438 = vmatpush1.msra.mxu0 %v262
    %439 = vmatprep.subr.mxu0 0.0
    %440 = vmatpush1.msra.mxu0 %v263
    %441 = vmatprep.subr.mxu0 0.0
    %442 = vmatpush1.msra.mxu0 %v264
    %443 = vmatprep.subr.mxu0 0.0
    %444 = vmatpush1.msra.mxu0 %v265
    %445 = vmatprep.subr.mxu0 0.0
    %446 = vmatpush1.msra.mxu0 %v266
    %447 = vmatprep.subr.mxu0 0.0
    %448 = vmatpush1.msra.mxu0 0.0
    %449 = vmatprep.subr.mxu0 0.0
    %450 = vmatpush1.msra.mxu0 0.0
    %451 = vmatprep.subr.mxu0 0.0
    %452 = vmatpush1.msra.mxu0 0.0
    %453 = vmatprep.subr.mxu0 0.0
    %454 = vmatpush1.msra.mxu0 0.0
    %455 = vmatprep.subr.mxu0 0.0
    %456 = vmatpush1.msra.mxu0 0.0
    %457 = vmatprep.subr.mxu0 0.0
    %458 = vmatpush1.msra.mxu0 0.0
    %459 = vmatprep.subr.mxu0 0.0
    %460 = vmatpush1.msra.mxu0 0.0
    %461 = vmatprep.subr.mxu0 0.0
    %462 = vmatpush1.msra.mxu0 0.0
    %463 = vmatprep.subr.mxu0 0.0
    %464 = vmatpush1.msra.mxu0 0.0
    %465 = vmatprep.subr.mxu0 0.0
    %466 = vmatpush1.msra.mxu0 0.0
    %467 = vmatprep.subr.mxu0 0.0
    %468 = vmatpush1.msra.mxu0 0.0
    %469 = vmatprep.subr.mxu0 0.0
    %470 = vmatpush1.msra.mxu0 0.0
    %471 = vmatprep.subr.mxu0 0.0
    %472 = vmatpush1.msra.mxu0 0.0
    %473 = vmatprep.subr.mxu0 0.0
    %474 = vmatpush1.msra.mxu0 0.0
    %475 = vmatprep.subr.mxu0 0.0
    %476 = vmatpush1.msra.mxu0 0.0
    %477 = vmatprep.subr.mxu0 0.0
    %478 = vmatpush1.msra.mxu0 0.0
    %479 = vmatprep.mubr.f32.mxu0 0.0
    %480 = vmatmul.mubr.f32.gmra.mrb[0].mxu0 %v413
    %v481 = vpop.f32.mrb[0].mxu0
    %v482 = vadd.f32 0.0, %v481
    %v483 = vpop.f32.mrb[0].mxu0
    %484 = vdwg.mxu0
    %v485 = vadd.f32 %v228, %v482
    %v486 = vtanh.pop %v485
    %487 = vst [vmem:[#allocation2 + $0x18] sm:$0xff] %v486
    %488 = vmatprep.subr.mxu0 0.0
    %489 = vmatpush1.msra.mxu0 %v251
    %490 = vmatprep.subr.mxu0 0.0
    %491 = vmatpush1.msra.mxu0 %v252
    %492 = vmatprep.subr.mxu0 0.0
    %493 = vmatpush1.msra.mxu0 %v253
    %494 = vmatprep.subr.mxu0 0.0
    %495 = vmatpush1.msra.mxu0 %v254
    %496 = vmatprep.subr.mxu0 0.0
    %497 = vmatpush1.msra.mxu0 %v255
    %498 = vmatprep.subr.mxu0 0.0
    %499 = vmatpush1.msra.mxu0 %v256
    %500 = vmatprep.subr.mxu0 0.0
    %501 = vmatpush1.msra.mxu0 %v257
    %502 = vmatprep.subr.mxu0 0.0
    %503 = vmatpush1.msra.mxu0 %v258
    %504 = vmatprep.subr.mxu0 0.0
    %505 = vmatpush1.msra.mxu0 %v259
    %506 = vmatprep.subr.mxu0 0.0
    %507 = vmatpush1.msra.mxu0 %v260
    %508 = vmatprep.subr.mxu0 0.0
    %509 = vmatpush1.msra.mxu0 %v261
    %510 = vmatprep.subr.mxu0 0.0
    %511 = vmatpush1.msra.mxu0 %v262
    %512 = vmatprep.subr.mxu0 0.0
    %513 = vmatpush1.msra.mxu0 %v263
    %514 = vmatprep.subr.mxu0 0.0
    %515 = vmatpush1.msra.mxu0 %v264
    %516 = vmatprep.subr.mxu0 0.0
    %517 = vmatpush1.msra.mxu0 %v265
    %518 = vmatprep.subr.mxu0 0.0
    %519 = vmatpush1.msra.mxu0 %v266
    %520 = vmatprep.subr.mxu0 0.0
    %521 = vmatpush1.msra.mxu0 0.0
    %522 = vmatprep.subr.mxu0 0.0
    %523 = vmatpush1.msra.mxu0 0.0
    %524 = vmatprep.subr.mxu0 0.0
    %525 = vmatpush1.msra.mxu0 0.0
    %526 = vmatprep.subr.mxu0 0.0
    %527 = vmatpush1.msra.mxu0 0.0
    %528 = vmatprep.subr.mxu0 0.0
    %529 = vmatpush1.msra.mxu0 0.0
    %530 = vmatprep.subr.mxu0 0.0
    %531 = vmatpush1.msra.mxu0 0.0
    %532 = vmatprep.subr.mxu0 0.0
    %533 = vmatpush1.msra.mxu0 0.0
    %534 = vmatprep.subr.mxu0 0.0
    %535 = vmatpush1.msra.mxu0 0.0
    %536 = vmatprep.subr.mxu0 0.0
    %537 = vmatpush1.msra.mxu0 0.0
    %538 = vmatprep.subr.mxu0 0.0
    %539 = vmatpush1.msra.mxu0 0.0
    %540 = vmatprep.subr.mxu0 0.0
    %541 = vmatpush1.msra.mxu0 0.0
    %542 = vmatprep.subr.mxu0 0.0
    %543 = vmatpush1.msra.mxu0 0.0
    %544 = vmatprep.subr.mxu0 0.0
    %545 = vmatpush1.msra.mxu0 0.0
    %546 = vmatprep.subr.mxu0 0.0
    %547 = vmatpush1.msra.mxu0 0.0
    %548 = vmatprep.subr.mxu0 0.0
    %549 = vmatpush1.msra.mxu0 0.0
    %550 = vmatprep.subr.mxu0 0.0
    %551 = vmatpush1.msra.mxu0 0.0
    %552 = vmatprep.mubr.f32.mxu0 0.0
    %553 = vmatmul.mubr.f32.gmra.mrb[0].mxu0 %v486
    %v554 = vpop.f32.mrb[0].mxu0
    %v555 = vadd.f32 0.0, %v554
    %v556 = vpop.f32.mrb[0].mxu0
    %557 = vdwg.mxu0
    %v558 = vadd.f32 %v233, %v555
    %v559 = vtanh.pop %v558
    %560 = vst [vmem:[#allocation2 + $0x20] sm:$0xff] %v559
    %561 = vmatprep.subr.mxu0 0.0
    %562 = vmatpush1.msra.mxu0 %v251
    %563 = vmatprep.subr.mxu0 0.0
    %564 = vmatpush1.msra.mxu0 %v252
    %565 = vmatprep.subr.mxu0 0.0
    %566 = vmatpush1.msra.mxu0 %v253
    %567 = vmatprep.subr.mxu0 0.0
    %568 = vmatpush1.msra.mxu0 %v254
    %569 = vmatprep.subr.mxu0 0.0
    %570 = vmatpush1.msra.mxu0 %v255
    %571 = vmatprep.subr.mxu0 0.0
    %572 = vmatpush1.msra.mxu0 %v256
    %573 = vmatprep.subr.mxu0 0.0
    %574 = vmatpush1.msra.mxu0 %v257
    %575 = vmatprep.subr.mxu0 0.0
    %576 = vmatpush1.msra.mxu0 %v258
    %577 = vmatprep.subr.mxu0 0.0
    %578 = vmatpush1.msra.mxu0 %v259
    %579 = vmatprep.subr.mxu0 0.0
    %580 = vmatpush1.msra.mxu0 %v260
    %581 = vmatprep.subr.mxu0 0.0
    %582 = vmatpush1.msra.mxu0 %v261
    %583 = vmatprep.subr.mxu0 0.0
    %584 = vmatpush1.msra.mxu0 %v262
    %585 = vmatprep.subr.mxu0 0.0
    %586 = vmatpush1.msra.mxu0 %v263
    %587 = vmatprep.subr.mxu0 0.0
    %588 = vmatpush1.msra.mxu0 %v264
    %589 = vmatprep.subr.mxu0 0.0
    %590 = vmatpush1.msra.mxu0 %v265
    %591 = vmatprep.subr.mxu0 0.0
    %592 = vmatpush1.msra.mxu0 %v266
    %593 = vmatprep.subr.mxu0 0.0
    %594 = vmatpush1.msra.mxu0 0.0
    %595 = vmatprep.subr.mxu0 0.0
    %596 = vmatpush1.msra.mxu0 0.0
    %597 = vmatprep.subr.mxu0 0.0
    %598 = vmatpush1.msra.mxu0 0.0
    %599 = vmatprep.subr.mxu0 0.0
    %600 = vmatpush1.msra.mxu0 0.0
    %601 = vmatprep.subr.mxu0 0.0
    %602 = vmatpush1.msra.mxu0 0.0
    %603 = vmatprep.subr.mxu0 0.0
    %604 = vmatpush1.msra.mxu0 0.0
    %605 = vmatprep.subr.mxu0 0.0
    %606 = vmatpush1.msra.mxu0 0.0
    %607 = vmatprep.subr.mxu0 0.0
    %608 = vmatpush1.msra.mxu0 0.0
    %609 = vmatprep.subr.mxu0 0.0
    %610 = vmatpush1.msra.mxu0 0.0
    %611 = vmatprep.subr.mxu0 0.0
    %612 = vmatpush1.msra.mxu0 0.0
    %613 = vmatprep.subr.mxu0 0.0
    %614 = vmatpush1.msra.mxu0 0.0
    %615 = vmatprep.subr.mxu0 0.0
    %616 = vmatpush1.msra.mxu0 0.0
    %617 = vmatprep.subr.mxu0 0.0
    %618 = vmatpush1.msra.mxu0 0.0
    %619 = vmatprep.subr.mxu0 0.0
    %620 = vmatpush1.msra.mxu0 0.0
    %621 = vmatprep.subr.mxu0 0.0
    %622 = vmatpush1.msra.mxu0 0.0
    %623 = vmatprep.subr.mxu0 0.0
    %624 = vmatpush1.msra.mxu0 0.0
    %625 = vmatprep.mubr.f32.mxu0 0.0
    %626 = vmatmul.mubr.f32.gmra.mrb[0].mxu0 %v559
    %v627 = vpop.f32.mrb[0].mxu0
    %v628 = vadd.f32 0.0, %v627
    %v629 = vpop.f32.mrb[0].mxu0
    %630 = vdwg.mxu0
    %v631 = vadd.f32 %v238, %v628
    %v632 = vtanh.pop %v631
    %633 = vst [vmem:[#allocation2 + $0x28] sm:$0xff] %v632
    %634 = vmatprep.subr.mxu0 0.0
    %635 = vmatpush1.msra.mxu0 %v251
    %636 = vmatprep.subr.mxu0 0.0
    %637 = vmatpush1.msra.mxu0 %v252
    %638 = vmatprep.subr.mxu0 0.0
    %639 = vmatpush1.msra.mxu0 %v253
    %640 = vmatprep.subr.mxu0 0.0
    %641 = vmatpush1.msra.mxu0 %v254
    %642 = vmatprep.subr.mxu0 0.0
    %643 = vmatpush1.msra.mxu0 %v255
    %644 = vmatprep.subr.mxu0 0.0
    %645 = vmatpush1.msra.mxu0 %v256
    %646 = vmatprep.subr.mxu0 0.0
    %647 = vmatpush1.msra.mxu0 %v257
    %648 = vmatprep.subr.mxu0 0.0
    %649 = vmatpush1.msra.mxu0 %v258
    %650 = vmatprep.subr.mxu0 0.0
    %651 = vmatpush1.msra.mxu0 %v259
    %652 = vmatprep.subr.mxu0 0.0
    %653 = vmatpush1.msra.mxu0 %v260
    %654 = vmatprep.subr.mxu0 0.0
    %655 = vmatpush1.msra.mxu0 %v261
    %656 = vmatprep.subr.mxu0 0.0
    %657 = vmatpush1.msra.mxu0 %v262
    %658 = vmatprep.subr.mxu0 0.0
    %659 = vmatpush1.msra.mxu0 %v263
    %660 = vmatprep.subr.mxu0 0.0
    %661 = vmatpush1.msra.mxu0 %v264
    %662 = vmatprep.subr.mxu0 0.0
    %663 = vmatpush1.msra.mxu0 %v265
    %664 = vmatprep.subr.mxu0 0.0
    %665 = vmatpush1.msra.mxu0 %v266
    %666 = vmatprep.subr.mxu0 0.0
    %667 = vmatpush1.msra.mxu0 0.0
    %668 = vmatprep.subr.mxu0 0.0
    %669 = vmatpush1.msra.mxu0 0.0
    %670 = vmatprep.subr.mxu0 0.0
    %671 = vmatpush1.msra.mxu0 0.0
    %672 = vmatprep.subr.mxu0 0.0
    %673 = vmatpush1.msra.mxu0 0.0
    %674 = vmatprep.subr.mxu0 0.0
    %675 = vmatpush1.msra.mxu0 0.0
    %676 = vmatprep.subr.mxu0 0.0
    %677 = vmatpush1.msra.mxu0 0.0
    %678 = vmatprep.subr.mxu0 0.0
    %679 = vmatpush1.msra.mxu0 0.0
    %680 = vmatprep.subr.mxu0 0.0
    %681 = vmatpush1.msra.mxu0 0.0
    %682 = vmatprep.subr.mxu0 0.0
    %683 = vmatpush1.msra.mxu0 0.0
    %684 = vmatprep.subr.mxu0 0.0
    %685 = vmatpush1.msra.mxu0 0.0
    %686 = vmatprep.subr.mxu0 0.0
    %687 = vmatpush1.msra.mxu0 0.0
    %688 = vmatprep.subr.mxu0 0.0
    %689 = vmatpush1.msra.mxu0 0.0
    %690 = vmatprep.subr.mxu0 0.0
    %691 = vmatpush1.msra.mxu0 0.0
    %692 = vmatprep.subr.mxu0 0.0
    %693 = vmatpush1.msra.mxu0 0.0
    %694 = vmatprep.subr.mxu0 0.0
    %695 = vmatpush1.msra.mxu0 0.0
    %696 = vmatprep.subr.mxu0 0.0
    %697 = vmatpush1.msra.mxu0 0.0
    %698 = vmatprep.mubr.f32.mxu0 0.0
    %699 = vmatmul.mubr.f32.gmra.mrb[0].mxu0 %v632
    %v700 = vpop.f32.mrb[0].mxu0
    %v701 = vadd.f32 0.0, %v700
    %v702 = vpop.f32.mrb[0].mxu0
    %703 = vdwg.mxu0
    %v704 = vadd.f32 %v243, %v701
    %v705 = vtanh.pop %v704
    %706 = vst [vmem:[#allocation2 + $0x30] sm:$0xff] %v705
    %707 = vmatprep.subr.mxu0 0.0
    %708 = vmatpush1.msra.mxu0 %v251
    %709 = vmatprep.subr.mxu0 0.0
    %710 = vmatpush1.msra.mxu0 %v252
    %711 = vmatprep.subr.mxu0 0.0
    %712 = vmatpush1.msra.mxu0 %v253
    %713 = vmatprep.subr.mxu0 0.0
    %714 = vmatpush1.msra.mxu0 %v254
    %715 = vmatprep.subr.mxu0 0.0
    %716 = vmatpush1.msra.mxu0 %v255
    %717 = vmatprep.subr.mxu0 0.0
    %718 = vmatpush1.msra.mxu0 %v256
    %719 = vmatprep.subr.mxu0 0.0
    %720 = vmatpush1.msra.mxu0 %v257
    %721 = vmatprep.subr.mxu0 0.0
    %722 = vmatpush1.msra.mxu0 %v258
    %723 = vmatprep.subr.mxu0 0.0
    %724 = vmatpush1.msra.mxu0 %v259
    %725 = vmatprep.subr.mxu0 0.0
    %726 = vmatpush1.msra.mxu0 %v260
    %727 = vmatprep.subr.mxu0 0.0
    %728 = vmatpush1.msra.mxu0 %v261
    %729 = vmatprep.subr.mxu0 0.0
    %730 = vmatpush1.msra.mxu0 %v262
    %731 = vmatprep.subr.mxu0 0.0
    %732 = vmatpush1.msra.mxu0 %v263
    %733 = vmatprep.subr.mxu0 0.0
    %734 = vmatpush1.msra.mxu0 %v264
    %735 = vmatprep.subr.mxu0 0.0
    %736 = vmatpush1.msra.mxu0 %v265
    %737 = vmatprep.subr.mxu0 0.0
    %738 = vmatpush1.msra.mxu0 %v266
    %739 = vmatprep.subr.mxu0 0.0
    %740 = vmatpush1.msra.mxu0 0.0
    %741 = vmatprep.subr.mxu0 0.0
    %742 = vmatpush1.msra.mxu0 0.0
    %743 = vmatprep.subr.mxu0 0.0
    %744 = vmatpush1.msra.mxu0 0.0
    %745 = vmatprep.subr.mxu0 0.0
    %746 = vmatpush1.msra.mxu0 0.0
    %747 = vmatprep.subr.mxu0 0.0
    %748 = vmatpush1.msra.mxu0 0.0
    %749 = vmatprep.subr.mxu0 0.0
    %750 = vmatpush1.msra.mxu0 0.0
    %751 = vmatprep.subr.mxu0 0.0
    %752 = vmatpush1.msra.mxu0 0.0
    %753 = vmatprep.subr.mxu0 0.0
    %754 = vmatpush1.msra.mxu0 0.0
    %755 = vmatprep.subr.mxu0 0.0
    %756 = vmatpush1.msra.mxu0 0.0
    %757 = vmatprep.subr.mxu0 0.0
    %758 = vmatpush1.msra.mxu0 0.0
    %759 = vmatprep.subr.mxu0 0.0
    %760 = vmatpush1.msra.mxu0 0.0
    %761 = vmatprep.subr.mxu0 0.0
    %762 = vmatpush1.msra.mxu0 0.0
    %763 = vmatprep.subr.mxu0 0.0
    %764 = vmatpush1.msra.mxu0 0.0
    %765 = vmatprep.subr.mxu0 0.0
    %766 = vmatpush1.msra.mxu0 0.0
    %767 = vmatprep.subr.mxu0 0.0
    %768 = vmatpush1.msra.mxu0 0.0
    %769 = vmatprep.subr.mxu0 0.0
    %770 = vmatpush1.msra.mxu0 0.0
    %771 = vmatprep.mubr.f32.mxu0 0.0
    %772 = vmatmul.mubr.f32.gmra.mrb[0].mxu0 %v705
    %v773 = vpop.f32.mrb[0].mxu0
    %v774 = vadd.f32 0.0, %v773
    %v775 = vpop.f32.mrb[0].mxu0
    %776 = vdwg.mxu0
    %v777 = vadd.f32 %v248, %v774
    %v778 = vtanh.pop %v777
    %779 = vst [vmem:[#allocation2 + $0x38] sm:$0xff] %v778
    %v780 = vld [vmem:[#allocation2] sm:$0xff]
    %v781 = vld [vmem:[#allocation2 + $0x8] sm:$0xff]
    %v782 = vld [vmem:[#allocation2 + $0x10] sm:$0xff]
    %v783 = vld [vmem:[#allocation2 + $0x18] sm:$0xff]
    %v784 = vld [vmem:[#allocation2 + $0x20] sm:$0xff]
    %v785 = vld [vmem:[#allocation2 + $0x28] sm:$0xff]
    %v786 = vld [vmem:[#allocation2 + $0x30] sm:$0xff]
    %v787 = vld [vmem:[#allocation2 + $0x38] sm:$0xff]
    %v788 = vld [vmem:[#allocation10] sm:$0xff]
    %v789 = vld [vmem:[#allocation10 + $0x8] sm:$0xff]
    %v790 = vld [vmem:[#allocation10 + $0x10] sm:$0xff]
    %v791 = vld [vmem:[#allocation10 + $0x18] sm:$0xff]
    %v792 = vld [vmem:[#allocation10 + $0x20] sm:$0xff]
    %v793 = vld [vmem:[#allocation10 + $0x28] sm:$0xff]
    %v794 = vld [vmem:[#allocation10 + $0x30] sm:$0xff]
    %v795 = vld [vmem:[#allocation10 + $0x38] sm:$0xff]
    %v796 = vld [vmem:[#allocation10 + $0x40] sm:$0xff]
    %v797 = vld [vmem:[#allocation10 + $0x48] sm:$0xff]
    %v798 = vld [vmem:[#allocation10 + $0x50] sm:$0xff]
    %v799 = vld [vmem:[#allocation10 + $0x58] sm:$0xff]
    %v800 = vld [vmem:[#allocation10 + $0x60] sm:$0xff]
    %v801 = vld [vmem:[#allocation10 + $0x68] sm:$0xff]
    %v802 = vld [vmem:[#allocation10 + $0x70] sm:$0xff]
    %v803 = vld [vmem:[#allocation10 + $0x78] sm:$0xff]
    %v804 = vld [vmem:[%s6] sm:$0x1]
    %v806 = vlaneseq
    %v807 = vshrl.u32 %v806, 7
    %v808 = vsub.s32 0, %v807
    %v809 = vrot.slane %v804, %v808
    %811 = vmatprep.subr.mxu0 0.0
    %812 = vmatpush1.msra.mxu0 %v788
    %813 = vmatprep.subr.mxu0 0.0
    %814 = vmatpush1.msra.mxu0 %v789
    %815 = vmatprep.subr.mxu0 0.0
    %816 = vmatpush1.msra.mxu0 %v790
    %817 = vmatprep.subr.mxu0 0.0
    %818 = vmatpush1.msra.mxu0 %v791
    %819 = vmatprep.subr.mxu0 0.0
    %820 = vmatpush1.msra.mxu0 %v792
    %821 = vmatprep.subr.mxu0 0.0
    %822 = vmatpush1.msra.mxu0 %v793
    %823 = vmatprep.subr.mxu0 0.0
    %824 = vmatpush1.msra.mxu0 %v794
    %825 = vmatprep.subr.mxu0 0.0
    %826 = vmatpush1.msra.mxu0 %v795
    %827 = vmatprep.subr.mxu0 0.0
    %828 = vmatpush1.msra.mxu0 %v796
    %829 = vmatprep.subr.mxu0 0.0
    %830 = vmatpush1.msra.mxu0 %v797
    %831 = vmatprep.subr.mxu0 0.0
    %832 = vmatpush1.msra.mxu0 %v798
    %833 = vmatprep.subr.mxu0 0.0
    %834 = vmatpush1.msra.mxu0 %v799
    %835 = vmatprep.subr.mxu0 0.0
    %836 = vmatpush1.msra.mxu0 %v800
    %837 = vmatprep.subr.mxu0 0.0
    %838 = vmatpush1.msra.mxu0 %v801
    %839 = vmatprep.subr.mxu0 0.0
    %840 = vmatpush1.msra.mxu0 %v802
    %841 = vmatprep.subr.mxu0 0.0
    %842 = vmatpush1.msra.mxu0 %v803
    %843 = vmatprep.subr.mxu0 0.0
    %844 = vmatpush1.msra.mxu0 0.0
    %845 = vmatprep.subr.mxu0 0.0
    %846 = vmatpush1.msra.mxu0 0.0
    %847 = vmatprep.subr.mxu0 0.0
    %848 = vmatpush1.msra.mxu0 0.0
    %849 = vmatprep.subr.mxu0 0.0
    %850 = vmatpush1.msra.mxu0 0.0
    %851 = vmatprep.subr.mxu0 0.0
    %852 = vmatpush1.msra.mxu0 0.0
    %853 = vmatprep.subr.mxu0 0.0
    %854 = vmatpush1.msra.mxu0 0.0
    %855 = vmatprep.subr.mxu0 0.0
    %856 = vmatpush1.msra.mxu0 0.0
    %857 = vmatprep.subr.mxu0 0.0
    %858 = vmatpush1.msra.mxu0 0.0
    %859 = vmatprep.subr.mxu0 0.0
    %860 = vmatpush1.msra.mxu0 0.0
    %861 = vmatprep.subr.mxu0 0.0
    %862 = vmatpush1.msra.mxu0 0.0
    %863 = vmatprep.subr.mxu0 0.0
    %864 = vmatpush1.msra.mxu0 0.0
    %865 = vmatprep.subr.mxu0 0.0
    %866 = vmatpush1.msra.mxu0 0.0
    %867 = vmatprep.subr.mxu0 0.0
    %868 = vmatpush1.msra.mxu0 0.0
    %869 = vmatprep.subr.mxu0 0.0
    %870 = vmatpush1.msra.mxu0 0.0
    %871 = vmatprep.subr.mxu0 0.0
    %872 = vmatpush1.msra.mxu0 0.0
    %873 = vmatprep.subr.mxu0 0.0
    %874 = vmatpush1.msra.mxu0 0.0
    %875 = vmatprep.mubr.f32.mxu0 0.0
    %876 = vmatmul.mubr.f32.gmra.mrb[0].mxu0 %v780
    %v877 = vpop.f32.mrb[0].mxu0
    %v878 = vadd.f32 %v809, %v877
    %v879 = vpop.f32.mrb[0].mxu0
    %880 = vmatprep.mubr.f32.mxu0 0.0
    %881 = vmatmul.mubr.f32.gmra.mrb[0].mxu0 %v781
    %v882 = vpop.f32.mrb[0].mxu0
    %v883 = vadd.f32 %v809, %v882
    %v884 = vpop.f32.mrb[0].mxu0
    %885 = vmatprep.mubr.f32.mxu0 0.0
    %886 = vmatmul.mubr.f32.gmra.mrb[0].mxu0 %v782
    %v887 = vpop.f32.mrb[0].mxu0
    %v888 = vadd.f32 %v809, %v887
    %v889 = vpop.f32.mrb[0].mxu0
    %890 = vmatprep.mubr.f32.mxu0 0.0
    %891 = vmatmul.mubr.f32.gmra.mrb[0].mxu0 %v783
    %v892 = vpop.f32.mrb[0].mxu0
    %v893 = vadd.f32 %v809, %v892
    %v894 = vpop.f32.mrb[0].mxu0
    %895 = vmatprep.mubr.f32.mxu0 0.0
    %896 = vmatmul.mubr.f32.gmra.mrb[0].mxu0 %v784
    %v897 = vpop.f32.mrb[0].mxu0
    %v898 = vadd.f32 %v809, %v897
    %v899 = vpop.f32.mrb[0].mxu0
    %900 = vmatprep.mubr.f32.mxu0 0.0
    %901 = vmatmul.mubr.f32.gmra.mrb[0].mxu0 %v785
    %v902 = vpop.f32.mrb[0].mxu0
    %v903 = vadd.f32 %v809, %v902
    %v904 = vpop.f32.mrb[0].mxu0
    %905 = vmatprep.mubr.f32.mxu0 0.0
    %906 = vmatmul.mubr.f32.gmra.mrb[0].mxu0 %v786
    %v907 = vpop.f32.mrb[0].mxu0
    %v908 = vadd.f32 %v809, %v907
    %v909 = vpop.f32.mrb[0].mxu0
    %910 = vmatprep.mubr.f32.mxu0 0.0
    %911 = vmatmul.mubr.f32.gmra.mrb[0].mxu0 %v787
    %v912 = vpop.f32.mrb[0].mxu0
    %v913 = vadd.f32 %v809, %v912
    %v914 = vpop.f32.mrb[0].mxu0
    %915 = vdwg.mxu0
    %v916 = vld [vmem:[#allocation12] sm:$0xff]
    %v917 = vld [vmem:[#allocation12 + $0x8] sm:$0xff]
    %v918 = vld [vmem:[#allocation12 + $0x10] sm:$0xff]
    %v919 = vld [vmem:[#allocation12 + $0x18] sm:$0xff]
    %v920 = vld [vmem:[#allocation12 + $0x20] sm:$0xff]
    %v921 = vld [vmem:[#allocation12 + $0x28] sm:$0xff]
    %v922 = vld [vmem:[#allocation12 + $0x30] sm:$0xff]
    %v923 = vld [vmem:[#allocation12 + $0x38] sm:$0xff]
    %v924 = vld [vmem:[#allocation12 + $0x40] sm:$0xff]
    %v925 = vld [vmem:[#allocation12 + $0x48] sm:$0xff]
    %v926 = vld [vmem:[#allocation12 + $0x50] sm:$0xff]
    %v927 = vld [vmem:[#allocation12 + $0x58] sm:$0xff]
    %v928 = vld [vmem:[#allocation12 + $0x60] sm:$0xff]
    %v929 = vld [vmem:[#allocation12 + $0x68] sm:$0xff]
    %v930 = vld [vmem:[#allocation12 + $0x70] sm:$0xff]
    %v931 = vld [vmem:[#allocation12 + $0x78] sm:$0xff]
    %v932 = vtanh.pop %v878
    %933 = vmatprep.subr.mxu0 0.0
    %934 = vmatpush1.msra.mxu0 %v916
    %935 = vmatprep.subr.mxu0 0.0
    %936 = vmatpush1.msra.mxu0 %v917
    %937 = vmatprep.subr.mxu0 0.0
    %938 = vmatpush1.msra.mxu0 %v918
    %939 = vmatprep.subr.mxu0 0.0
    %940 = vmatpush1.msra.mxu0 %v919
    %941 = vmatprep.subr.mxu0 0.0
    %942 = vmatpush1.msra.mxu0 %v920
    %943 = vmatprep.subr.mxu0 0.0
    %944 = vmatpush1.msra.mxu0 %v921
    %945 = vmatprep.subr.mxu0 0.0
    %946 = vmatpush1.msra.mxu0 %v922
    %947 = vmatprep.subr.mxu0 0.0
    %948 = vmatpush1.msra.mxu0 %v923
    %949 = vmatprep.subr.mxu0 0.0
    %950 = vmatpush1.msra.mxu0 %v924
    %951 = vmatprep.subr.mxu0 0.0
    %952 = vmatpush1.msra.mxu0 %v925
    %953 = vmatprep.subr.mxu0 0.0
    %954 = vmatpush1.msra.mxu0 %v926
    %955 = vmatprep.subr.mxu0 0.0
    %956 = vmatpush1.msra.mxu0 %v927
    %957 = vmatprep.subr.mxu0 0.0
    %958 = vmatpush1.msra.mxu0 %v928
    %959 = vmatprep.subr.mxu0 0.0
    %960 = vmatpush1.msra.mxu0 %v929
    %961 = vmatprep.subr.mxu0 0.0
    %962 = vmatpush1.msra.mxu0 %v930
    %963 = vmatprep.subr.mxu0 0.0
    %964 = vmatpush1.msra.mxu0 %v931
    %965 = vmatprep.subr.mxu0 0.0
    %966 = vmatpush1.msra.mxu0 0.0
    %967 = vmatprep.subr.mxu0 0.0
    %968 = vmatpush1.msra.mxu0 0.0
    %969 = vmatprep.subr.mxu0 0.0
    %970 = vmatpush1.msra.mxu0 0.0
    %971 = vmatprep.subr.mxu0 0.0
    %972 = vmatpush1.msra.mxu0 0.0
    %973 = vmatprep.subr.mxu0 0.0
    %974 = vmatpush1.msra.mxu0 0.0
    %975 = vmatprep.subr.mxu0 0.0
    %976 = vmatpush1.msra.mxu0 0.0
    %977 = vmatprep.subr.mxu0 0.0
    %978 = vmatpush1.msra.mxu0 0.0
    %979 = vmatprep.subr.mxu0 0.0
    %980 = vmatpush1.msra.mxu0 0.0
    %981 = vmatprep.subr.mxu0 0.0
    %982 = vmatpush1.msra.mxu0 0.0
    %983 = vmatprep.subr.mxu0 0.0
    %984 = vmatpush1.msra.mxu0 0.0
    %985 = vmatprep.subr.mxu0 0.0
    %986 = vmatpush1.msra.mxu0 0.0
    %987 = vmatprep.subr.mxu0 0.0
    %988 = vmatpush1.msra.mxu0 0.0
    %989 = vmatprep.subr.mxu0 0.0
    %990 = vmatpush1.msra.mxu0 0.0
    %991 = vmatprep.subr.mxu0 0.0
    %992 = vmatpush1.msra.mxu0 0.0
    %993 = vmatprep.subr.mxu0 0.0
    %994 = vmatpush1.msra.mxu0 0.0
    %995 = vmatprep.subr.mxu0 0.0
    %996 = vmatpush1.msra.mxu0 0.0
    %997 = vmatprep.mubr.f32.mxu0 0.0
    %998 = vmatmul.mubr.f32.gmra.mrb[0].mxu0 %v932
    %v999 = vpop.f32.mrb[0].mxu0
    %v1000 = vadd.f32 0.0, %v999
    %v1001 = vpop.f32.mrb[0].mxu0
    %1002 = vdwg.mxu0
    %v1003 = vadd.f32 %v883, %v1000
    %v1004 = vtanh.pop %v1003
    %1005 = vmatprep.subr.mxu0 0.0
    %1006 = vmatpush1.msra.mxu0 %v916
    %1007 = vmatprep.subr.mxu0 0.0
    %1008 = vmatpush1.msra.mxu0 %v917
    %1009 = vmatprep.subr.mxu0 0.0
    %1010 = vmatpush1.msra.mxu0 %v918
    %1011 = vmatprep.subr.mxu0 0.0
    %1012 = vmatpush1.msra.mxu0 %v919
    %1013 = vmatprep.subr.mxu0 0.0
    %1014 = vmatpush1.msra.mxu0 %v920
    %1015 = vmatprep.subr.mxu0 0.0
    %1016 = vmatpush1.msra.mxu0 %v921
    %1017 = vmatprep.subr.mxu0 0.0
    %1018 = vmatpush1.msra.mxu0 %v922
    %1019 = vmatprep.subr.mxu0 0.0
    %1020 = vmatpush1.msra.mxu0 %v923
    %1021 = vmatprep.subr.mxu0 0.0
    %1022 = vmatpush1.msra.mxu0 %v924
    %1023 = vmatprep.subr.mxu0 0.0
    %1024 = vmatpush1.msra.mxu0 %v925
    %1025 = vmatprep.subr.mxu0 0.0
    %1026 = vmatpush1.msra.mxu0 %v926
    %1027 = vmatprep.subr.mxu0 0.0
    %1028 = vmatpush1.msra.mxu0 %v927
    %1029 = vmatprep.subr.mxu0 0.0
    %1030 = vmatpush1.msra.mxu0 %v928
    %1031 = vmatprep.subr.mxu0 0.0
    %1032 = vmatpush1.msra.mxu0 %v929
    %1033 = vmatprep.subr.mxu0 0.0
    %1034 = vmatpush1.msra.mxu0 %v930
    %1035 = vmatprep.subr.mxu0 0.0
    %1036 = vmatpush1.msra.mxu0 %v931
    %1037 = vmatprep.subr.mxu0 0.0
    %1038 = vmatpush1.msra.mxu0 0.0
    %1039 = vmatprep.subr.mxu0 0.0
    %1040 = vmatpush1.msra.mxu0 0.0
    %1041 = vmatprep.subr.mxu0 0.0
    %1042 = vmatpush1.msra.mxu0 0.0
    %1043 = vmatprep.subr.mxu0 0.0
    %1044 = vmatpush1.msra.mxu0 0.0
    %1045 = vmatprep.subr.mxu0 0.0
    %1046 = vmatpush1.msra.mxu0 0.0
    %1047 = vmatprep.subr.mxu0 0.0
    %1048 = vmatpush1.msra.mxu0 0.0
    %1049 = vmatprep.subr.mxu0 0.0
    %1050 = vmatpush1.msra.mxu0 0.0
    %1051 = vmatprep.subr.mxu0 0.0
    %1052 = vmatpush1.msra.mxu0 0.0
    %1053 = vmatprep.subr.mxu0 0.0
    %1054 = vmatpush1.msra.mxu0 0.0
    %1055 = vmatprep.subr.mxu0 0.0
    %1056 = vmatpush1.msra.mxu0 0.0
    %1057 = vmatprep.subr.mxu0 0.0
    %1058 = vmatpush1.msra.mxu0 0.0
    %1059 = vmatprep.subr.mxu0 0.0
    %1060 = vmatpush1.msra.mxu0 0.0
    %1061 = vmatprep.subr.mxu0 0.0
    %1062 = vmatpush1.msra.mxu0 0.0
    %1063 = vmatprep.subr.mxu0 0.0
    %1064 = vmatpush1.msra.mxu0 0.0
    %1065 = vmatprep.subr.mxu0 0.0
    %1066 = vmatpush1.msra.mxu0 0.0
    %1067 = vmatprep.subr.mxu0 0.0
    %1068 = vmatpush1.msra.mxu0 0.0
    %1069 = vmatprep.mubr.f32.mxu0 0.0
    %1070 = vmatmul.mubr.f32.gmra.mrb[0].mxu0 %v1004
    %v1071 = vpop.f32.mrb[0].mxu0
    %v1072 = vadd.f32 0.0, %v1071
    %v1073 = vpop.f32.mrb[0].mxu0
    %1074 = vdwg.mxu0
    %v1075 = vadd.f32 %v888, %v1072
    %v1076 = vtanh.pop %v1075
    %1077 = vmatprep.subr.mxu0 0.0
    %1078 = vmatpush1.msra.mxu0 %v916
    %1079 = vmatprep.subr.mxu0 0.0
    %1080 = vmatpush1.msra.mxu0 %v917
    %1081 = vmatprep.subr.mxu0 0.0
    %1082 = vmatpush1.msra.mxu0 %v918
    %1083 = vmatprep.subr.mxu0 0.0
    %1084 = vmatpush1.msra.mxu0 %v919
    %1085 = vmatprep.subr.mxu0 0.0
    %1086 = vmatpush1.msra.mxu0 %v920
    %1087 = vmatprep.subr.mxu0 0.0
    %1088 = vmatpush1.msra.mxu0 %v921
    %1089 = vmatprep.subr.mxu0 0.0
    %1090 = vmatpush1.msra.mxu0 %v922
    %1091 = vmatprep.subr.mxu0 0.0
    %1092 = vmatpush1.msra.mxu0 %v923
    %1093 = vmatprep.subr.mxu0 0.0
    %1094 = vmatpush1.msra.mxu0 %v924
    %1095 = vmatprep.subr.mxu0 0.0
    %1096 = vmatpush1.msra.mxu0 %v925
    %1097 = vmatprep.subr.mxu0 0.0
    %1098 = vmatpush1.msra.mxu0 %v926
    %1099 = vmatprep.subr.mxu0 0.0
    %1100 = vmatpush1.msra.mxu0 %v927
    %1101 = vmatprep.subr.mxu0 0.0
    %1102 = vmatpush1.msra.mxu0 %v928
    %1103 = vmatprep.subr.mxu0 0.0
    %1104 = vmatpush1.msra.mxu0 %v929
    %1105 = vmatprep.subr.mxu0 0.0
    %1106 = vmatpush1.msra.mxu0 %v930
    %1107 = vmatprep.subr.mxu0 0.0
    %1108 = vmatpush1.msra.mxu0 %v931
    %1109 = vmatprep.subr.mxu0 0.0
    %1110 = vmatpush1.msra.mxu0 0.0
    %1111 = vmatprep.subr.mxu0 0.0
    %1112 = vmatpush1.msra.mxu0 0.0
    %1113 = vmatprep.subr.mxu0 0.0
    %1114 = vmatpush1.msra.mxu0 0.0
    %1115 = vmatprep.subr.mxu0 0.0
    %1116 = vmatpush1.msra.mxu0 0.0
    %1117 = vmatprep.subr.mxu0 0.0
    %1118 = vmatpush1.msra.mxu0 0.0
    %1119 = vmatprep.subr.mxu0 0.0
    %1120 = vmatpush1.msra.mxu0 0.0
    %1121 = vmatprep.subr.mxu0 0.0
    %1122 = vmatpush1.msra.mxu0 0.0
    %1123 = vmatprep.subr.mxu0 0.0
    %1124 = vmatpush1.msra.mxu0 0.0
    %1125 = vmatprep.subr.mxu0 0.0
    %1126 = vmatpush1.msra.mxu0 0.0
    %1127 = vmatprep.subr.mxu0 0.0
    %1128 = vmatpush1.msra.mxu0 0.0
    %1129 = vmatprep.subr.mxu0 0.0
    %1130 = vmatpush1.msra.mxu0 0.0
    %1131 = vmatprep.subr.mxu0 0.0
    %1132 = vmatpush1.msra.mxu0 0.0
    %1133 = vmatprep.subr.mxu0 0.0
    %1134 = vmatpush1.msra.mxu0 0.0
    %1135 = vmatprep.subr.mxu0 0.0
    %1136 = vmatpush1.msra.mxu0 0.0
    %1137 = vmatprep.subr.mxu0 0.0
    %1138 = vmatpush1.msra.mxu0 0.0
    %1139 = vmatprep.subr.mxu0 0.0
    %1140 = vmatpush1.msra.mxu0 0.0
    %1141 = vmatprep.mubr.f32.mxu0 0.0
    %1142 = vmatmul.mubr.f32.gmra.mrb[0].mxu0 %v1076
    %v1143 = vpop.f32.mrb[0].mxu0
    %v1144 = vadd.f32 0.0, %v1143
    %v1145 = vpop.f32.mrb[0].mxu0
    %1146 = vdwg.mxu0
    %v1147 = vadd.f32 %v893, %v1144
    %v1148 = vtanh.pop %v1147
    %1149 = vmatprep.subr.mxu0 0.0
    %1150 = vmatpush1.msra.mxu0 %v916
    %1151 = vmatprep.subr.mxu0 0.0
    %1152 = vmatpush1.msra.mxu0 %v917
    %1153 = vmatprep.subr.mxu0 0.0
    %1154 = vmatpush1.msra.mxu0 %v918
    %1155 = vmatprep.subr.mxu0 0.0
    %1156 = vmatpush1.msra.mxu0 %v919
    %1157 = vmatprep.subr.mxu0 0.0
    %1158 = vmatpush1.msra.mxu0 %v920
    %1159 = vmatprep.subr.mxu0 0.0
    %1160 = vmatpush1.msra.mxu0 %v921
    %1161 = vmatprep.subr.mxu0 0.0
    %1162 = vmatpush1.msra.mxu0 %v922
    %1163 = vmatprep.subr.mxu0 0.0
    %1164 = vmatpush1.msra.mxu0 %v923
    %1165 = vmatprep.subr.mxu0 0.0
    %1166 = vmatpush1.msra.mxu0 %v924
    %1167 = vmatprep.subr.mxu0 0.0
    %1168 = vmatpush1.msra.mxu0 %v925
    %1169 = vmatprep.subr.mxu0 0.0
    %1170 = vmatpush1.msra.mxu0 %v926
    %1171 = vmatprep.subr.mxu0 0.0
    %1172 = vmatpush1.msra.mxu0 %v927
    %1173 = vmatprep.subr.mxu0 0.0
    %1174 = vmatpush1.msra.mxu0 %v928
    %1175 = vmatprep.subr.mxu0 0.0
    %1176 = vmatpush1.msra.mxu0 %v929
    %1177 = vmatprep.subr.mxu0 0.0
    %1178 = vmatpush1.msra.mxu0 %v930
    %1179 = vmatprep.subr.mxu0 0.0
    %1180 = vmatpush1.msra.mxu0 %v931
    %1181 = vmatprep.subr.mxu0 0.0
    %1182 = vmatpush1.msra.mxu0 0.0
    %1183 = vmatprep.subr.mxu0 0.0
    %1184 = vmatpush1.msra.mxu0 0.0
    %1185 = vmatprep.subr.mxu0 0.0
    %1186 = vmatpush1.msra.mxu0 0.0
    %1187 = vmatprep.subr.mxu0 0.0
    %1188 = vmatpush1.msra.mxu0 0.0
    %1189 = vmatprep.subr.mxu0 0.0
    %1190 = vmatpush1.msra.mxu0 0.0
    %1191 = vmatprep.subr.mxu0 0.0
    %1192 = vmatpush1.msra.mxu0 0.0
    %1193 = vmatprep.subr.mxu0 0.0
    %1194 = vmatpush1.msra.mxu0 0.0
    %1195 = vmatprep.subr.mxu0 0.0
    %1196 = vmatpush1.msra.mxu0 0.0
    %1197 = vmatprep.subr.mxu0 0.0
    %1198 = vmatpush1.msra.mxu0 0.0
    %1199 = vmatprep.subr.mxu0 0.0
    %1200 = vmatpush1.msra.mxu0 0.0
    %1201 = vmatprep.subr.mxu0 0.0
    %1202 = vmatpush1.msra.mxu0 0.0
    %1203 = vmatprep.subr.mxu0 0.0
    %1204 = vmatpush1.msra.mxu0 0.0
    %1205 = vmatprep.subr.mxu0 0.0
    %1206 = vmatpush1.msra.mxu0 0.0
    %1207 = vmatprep.subr.mxu0 0.0
    %1208 = vmatpush1.msra.mxu0 0.0
    %1209 = vmatprep.subr.mxu0 0.0
    %1210 = vmatpush1.msra.mxu0 0.0
    %1211 = vmatprep.subr.mxu0 0.0
    %1212 = vmatpush1.msra.mxu0 0.0
    %1213 = vmatprep.mubr.f32.mxu0 0.0
    %1214 = vmatmul.mubr.f32.gmra.mrb[0].mxu0 %v1148
    %v1215 = vpop.f32.mrb[0].mxu0
    %v1216 = vadd.f32 0.0, %v1215
    %v1217 = vpop.f32.mrb[0].mxu0
    %1218 = vdwg.mxu0
    %v1219 = vadd.f32 %v898, %v1216
    %v1220 = vtanh.pop %v1219
    %1221 = vmatprep.subr.mxu0 0.0
    %1222 = vmatpush1.msra.mxu0 %v916
    %1223 = vmatprep.subr.mxu0 0.0
    %1224 = vmatpush1.msra.mxu0 %v917
    %1225 = vmatprep.subr.mxu0 0.0
    %1226 = vmatpush1.msra.mxu0 %v918
    %1227 = vmatprep.subr.mxu0 0.0
    %1228 = vmatpush1.msra.mxu0 %v919
    %1229 = vmatprep.subr.mxu0 0.0
    %1230 = vmatpush1.msra.mxu0 %v920
    %1231 = vmatprep.subr.mxu0 0.0
    %1232 = vmatpush1.msra.mxu0 %v921
    %1233 = vmatprep.subr.mxu0 0.0
    %1234 = vmatpush1.msra.mxu0 %v922
    %1235 = vmatprep.subr.mxu0 0.0
    %1236 = vmatpush1.msra.mxu0 %v923
    %1237 = vmatprep.subr.mxu0 0.0
    %1238 = vmatpush1.msra.mxu0 %v924
    %1239 = vmatprep.subr.mxu0 0.0
    %1240 = vmatpush1.msra.mxu0 %v925
    %1241 = vmatprep.subr.mxu0 0.0
    %1242 = vmatpush1.msra.mxu0 %v926
    %1243 = vmatprep.subr.mxu0 0.0
    %1244 = vmatpush1.msra.mxu0 %v927
    %1245 = vmatprep.subr.mxu0 0.0
    %1246 = vmatpush1.msra.mxu0 %v928
    %1247 = vmatprep.subr.mxu0 0.0
    %1248 = vmatpush1.msra.mxu0 %v929
    %1249 = vmatprep.subr.mxu0 0.0
    %1250 = vmatpush1.msra.mxu0 %v930
    %1251 = vmatprep.subr.mxu0 0.0
    %1252 = vmatpush1.msra.mxu0 %v931
    %1253 = vmatprep.subr.mxu0 0.0
    %1254 = vmatpush1.msra.mxu0 0.0
    %1255 = vmatprep.subr.mxu0 0.0
    %1256 = vmatpush1.msra.mxu0 0.0
    %1257 = vmatprep.subr.mxu0 0.0
    %1258 = vmatpush1.msra.mxu0 0.0
    %1259 = vmatprep.subr.mxu0 0.0
    %1260 = vmatpush1.msra.mxu0 0.0
    %1261 = vmatprep.subr.mxu0 0.0
    %1262 = vmatpush1.msra.mxu0 0.0
    %1263 = vmatprep.subr.mxu0 0.0
    %1264 = vmatpush1.msra.mxu0 0.0
    %1265 = vmatprep.subr.mxu0 0.0
    %1266 = vmatpush1.msra.mxu0 0.0
    %1267 = vmatprep.subr.mxu0 0.0
    %1268 = vmatpush1.msra.mxu0 0.0
    %1269 = vmatprep.subr.mxu0 0.0
    %1270 = vmatpush1.msra.mxu0 0.0
    %1271 = vmatprep.subr.mxu0 0.0
    %1272 = vmatpush1.msra.mxu0 0.0
    %1273 = vmatprep.subr.mxu0 0.0
    %1274 = vmatpush1.msra.mxu0 0.0
    %1275 = vmatprep.subr.mxu0 0.0
    %1276 = vmatpush1.msra.mxu0 0.0
    %1277 = vmatprep.subr.mxu0 0.0
    %1278 = vmatpush1.msra.mxu0 0.0
    %1279 = vmatprep.subr.mxu0 0.0
    %1280 = vmatpush1.msra.mxu0 0.0
    %1281 = vmatprep.subr.mxu0 0.0
    %1282 = vmatpush1.msra.mxu0 0.0
    %1283 = vmatprep.subr.mxu0 0.0
    %1284 = vmatpush1.msra.mxu0 0.0
    %1285 = vmatprep.mubr.f32.mxu0 0.0
    %1286 = vmatmul.mubr.f32.gmra.mrb[0].mxu0 %v1220
    %v1287 = vpop.f32.mrb[0].mxu0
    %v1288 = vadd.f32 0.0, %v1287
    %v1289 = vpop.f32.mrb[0].mxu0
    %1290 = vdwg.mxu0
    %v1291 = vadd.f32 %v903, %v1288
    %v1292 = vtanh.pop %v1291
    %1293 = vmatprep.subr.mxu0 0.0
    %1294 = vmatpush1.msra.mxu0 %v916
    %1295 = vmatprep.subr.mxu0 0.0
    %1296 = vmatpush1.msra.mxu0 %v917
    %1297 = vmatprep.subr.mxu0 0.0
    %1298 = vmatpush1.msra.mxu0 %v918
    %1299 = vmatprep.subr.mxu0 0.0
    %1300 = vmatpush1.msra.mxu0 %v919
    %1301 = vmatprep.subr.mxu0 0.0
    %1302 = vmatpush1.msra.mxu0 %v920
    %1303 = vmatprep.subr.mxu0 0.0
    %1304 = vmatpush1.msra.mxu0 %v921
    %1305 = vmatprep.subr.mxu0 0.0
    %1306 = vmatpush1.msra.mxu0 %v922
    %1307 = vmatprep.subr.mxu0 0.0
    %1308 = vmatpush1.msra.mxu0 %v923
    %1309 = vmatprep.subr.mxu0 0.0
    %1310 = vmatpush1.msra.mxu0 %v924
    %1311 = vmatprep.subr.mxu0 0.0
    %1312 = vmatpush1.msra.mxu0 %v925
    %1313 = vmatprep.subr.mxu0 0.0
    %1314 = vmatpush1.msra.mxu0 %v926
    %1315 = vmatprep.subr.mxu0 0.0
    %1316 = vmatpush1.msra.mxu0 %v927
    %1317 = vmatprep.subr.mxu0 0.0
    %1318 = vmatpush1.msra.mxu0 %v928
    %1319 = vmatprep.subr.mxu0 0.0
    %1320 = vmatpush1.msra.mxu0 %v929
    %1321 = vmatprep.subr.mxu0 0.0
    %1322 = vmatpush1.msra.mxu0 %v930
    %1323 = vmatprep.subr.mxu0 0.0
    %1324 = vmatpush1.msra.mxu0 %v931
    %1325 = vmatprep.subr.mxu0 0.0
    %1326 = vmatpush1.msra.mxu0 0.0
    %1327 = vmatprep.subr.mxu0 0.0
    %1328 = vmatpush1.msra.mxu0 0.0
    %1329 = vmatprep.subr.mxu0 0.0
    %1330 = vmatpush1.msra.mxu0 0.0
    %1331 = vmatprep.subr.mxu0 0.0
    %1332 = vmatpush1.msra.mxu0 0.0
    %1333 = vmatprep.subr.mxu0 0.0
    %1334 = vmatpush1.msra.mxu0 0.0
    %1335 = vmatprep.subr.mxu0 0.0
    %1336 = vmatpush1.msra.mxu0 0.0
    %1337 = vmatprep.subr.mxu0 0.0
    %1338 = vmatpush1.msra.mxu0 0.0
    %1339 = vmatprep.subr.mxu0 0.0
    %1340 = vmatpush1.msra.mxu0 0.0
    %1341 = vmatprep.subr.mxu0 0.0
    %1342 = vmatpush1.msra.mxu0 0.0
    %1343 = vmatprep.subr.mxu0 0.0
    %1344 = vmatpush1.msra.mxu0 0.0
    %1345 = vmatprep.subr.mxu0 0.0
    %1346 = vmatpush1.msra.mxu0 0.0
    %1347 = vmatprep.subr.mxu0 0.0
    %1348 = vmatpush1.msra.mxu0 0.0
    %1349 = vmatprep.subr.mxu0 0.0
    %1350 = vmatpush1.msra.mxu0 0.0
    %1351 = vmatprep.subr.mxu0 0.0
    %1352 = vmatpush1.msra.mxu0 0.0
    %1353 = vmatprep.subr.mxu0 0.0
    %1354 = vmatpush1.msra.mxu0 0.0
    %1355 = vmatprep.subr.mxu0 0.0
    %1356 = vmatpush1.msra.mxu0 0.0
    %1357 = vmatprep.mubr.f32.mxu0 0.0
    %1358 = vmatmul.mubr.f32.gmra.mrb[0].mxu0 %v1292
    %v1359 = vpop.f32.mrb[0].mxu0
    %v1360 = vadd.f32 0.0, %v1359
    %v1361 = vpop.f32.mrb[0].mxu0
    %1362 = vdwg.mxu0
    %v1363 = vadd.f32 %v908, %v1360
    %v1364 = vtanh.pop %v1363
    %1365 = vmatprep.subr.mxu0 0.0
    %1366 = vmatpush1.msra.mxu0 %v916
    %1367 = vmatprep.subr.mxu0 0.0
    %1368 = vmatpush1.msra.mxu0 %v917
    %1369 = vmatprep.subr.mxu0 0.0
    %1370 = vmatpush1.msra.mxu0 %v918
    %1371 = vmatprep.subr.mxu0 0.0
    %1372 = vmatpush1.msra.mxu0 %v919
    %1373 = vmatprep.subr.mxu0 0.0
    %1374 = vmatpush1.msra.mxu0 %v920
    %1375 = vmatprep.subr.mxu0 0.0
    %1376 = vmatpush1.msra.mxu0 %v921
    %1377 = vmatprep.subr.mxu0 0.0
    %1378 = vmatpush1.msra.mxu0 %v922
    %1379 = vmatprep.subr.mxu0 0.0
    %1380 = vmatpush1.msra.mxu0 %v923
    %1381 = vmatprep.subr.mxu0 0.0
    %1382 = vmatpush1.msra.mxu0 %v924
    %1383 = vmatprep.subr.mxu0 0.0
    %1384 = vmatpush1.msra.mxu0 %v925
    %1385 = vmatprep.subr.mxu0 0.0
    %1386 = vmatpush1.msra.mxu0 %v926
    %1387 = vmatprep.subr.mxu0 0.0
    %1388 = vmatpush1.msra.mxu0 %v927
    %1389 = vmatprep.subr.mxu0 0.0
    %1390 = vmatpush1.msra.mxu0 %v928
    %1391 = vmatprep.subr.mxu0 0.0
    %1392 = vmatpush1.msra.mxu0 %v929
    %1393 = vmatprep.subr.mxu0 0.0
    %1394 = vmatpush1.msra.mxu0 %v930
    %1395 = vmatprep.subr.mxu0 0.0
    %1396 = vmatpush1.msra.mxu0 %v931
    %1397 = vmatprep.subr.mxu0 0.0
    %1398 = vmatpush1.msra.mxu0 0.0
    %1399 = vmatprep.subr.mxu0 0.0
    %1400 = vmatpush1.msra.mxu0 0.0
    %1401 = vmatprep.subr.mxu0 0.0
    %1402 = vmatpush1.msra.mxu0 0.0
    %1403 = vmatprep.subr.mxu0 0.0
    %1404 = vmatpush1.msra.mxu0 0.0
    %1405 = vmatprep.subr.mxu0 0.0
    %1406 = vmatpush1.msra.mxu0 0.0
    %1407 = vmatprep.subr.mxu0 0.0
    %1408 = vmatpush1.msra.mxu0 0.0
    %1409 = vmatprep.subr.mxu0 0.0
    %1410 = vmatpush1.msra.mxu0 0.0
    %1411 = vmatprep.subr.mxu0 0.0
    %1412 = vmatpush1.msra.mxu0 0.0
    %1413 = vmatprep.subr.mxu0 0.0
    %1414 = vmatpush1.msra.mxu0 0.0
    %1415 = vmatprep.subr.mxu0 0.0
    %1416 = vmatpush1.msra.mxu0 0.0
    %1417 = vmatprep.subr.mxu0 0.0
    %1418 = vmatpush1.msra.mxu0 0.0
    %1419 = vmatprep.subr.mxu0 0.0
    %1420 = vmatpush1.msra.mxu0 0.0
    %1421 = vmatprep.subr.mxu0 0.0
    %1422 = vmatpush1.msra.mxu0 0.0
    %1423 = vmatprep.subr.mxu0 0.0
    %1424 = vmatpush1.msra.mxu0 0.0
    %1425 = vmatprep.subr.mxu0 0.0
    %1426 = vmatpush1.msra.mxu0 0.0
    %1427 = vmatprep.subr.mxu0 0.0
    %1428 = vmatpush1.msra.mxu0 0.0
    %1429 = vmatprep.mubr.f32.mxu0 0.0
    %1430 = vmatmul.mubr.f32.gmra.mrb[0].mxu0 %v1364
    %v1431 = vpop.f32.mrb[0].mxu0
    %v1432 = vadd.f32 0.0, %v1431
    %v1433 = vpop.f32.mrb[0].mxu0
    %1434 = vdwg.mxu0
    %v1435 = vadd.f32 %v913, %v1432
    %v1436 = vtanh.pop %v1435
    %v1437 = vld [vmem:[#allocation13] sm:$0xff]
    %v1438 = vld [vmem:[#allocation13 + $0x8] sm:$0xff]
    %v1439 = vld [vmem:[#allocation13 + $0x10] sm:$0xff]
    %v1440 = vld [vmem:[#allocation13 + $0x18] sm:$0xff]
    %v1441 = vld [vmem:[#allocation13 + $0x20] sm:$0xff]
    %v1442 = vld [vmem:[#allocation13 + $0x28] sm:$0xff]
    %v1443 = vld [vmem:[#allocation13 + $0x30] sm:$0xff]
    %v1444 = vld [vmem:[#allocation13 + $0x38] sm:$0xff]
    %v1445 = vld [vmem:[#allocation13 + $0x40] sm:$0xff]
    %v1446 = vld [vmem:[#allocation13 + $0x48] sm:$0xff]
    %v1447 = vld [vmem:[#allocation13 + $0x50] sm:$0xff]
    %v1448 = vld [vmem:[#allocation13 + $0x58] sm:$0xff]
    %v1449 = vld [vmem:[#allocation13 + $0x60] sm:$0xff]
    %v1450 = vld [vmem:[#allocation13 + $0x68] sm:$0xff]
    %v1451 = vld [vmem:[#allocation13 + $0x70] sm:$0xff]
    %v1452 = vld [vmem:[#allocation13 + $0x78] sm:$0xff]
    %v1453 = vld [vmem:[%s8] sm:$0x1]
    %v1455 = vlaneseq
    %v1456 = vshrl.u32 %v1455, 7
    %v1457 = vsub.s32 0, %v1456
    %v1458 = vrot.slane %v1453, %v1457
    %1460 = vmatprep.subr.mxu0 0.0
    %1461 = vmatpush1.msra.mxu0 %v1437
    %1462 = vmatprep.subr.mxu0 0.0
    %1463 = vmatpush1.msra.mxu0 %v1438
    %1464 = vmatprep.subr.mxu0 0.0
    %1465 = vmatpush1.msra.mxu0 %v1439
    %1466 = vmatprep.subr.mxu0 0.0
    %1467 = vmatpush1.msra.mxu0 %v1440
    %1468 = vmatprep.subr.mxu0 0.0
    %1469 = vmatpush1.msra.mxu0 %v1441
    %1470 = vmatprep.subr.mxu0 0.0
    %1471 = vmatpush1.msra.mxu0 %v1442
    %1472 = vmatprep.subr.mxu0 0.0
    %1473 = vmatpush1.msra.mxu0 %v1443
    %1474 = vmatprep.subr.mxu0 0.0
    %1475 = vmatpush1.msra.mxu0 %v1444
    %1476 = vmatprep.subr.mxu0 0.0
    %1477 = vmatpush1.msra.mxu0 %v1445
    %1478 = vmatprep.subr.mxu0 0.0
    %1479 = vmatpush1.msra.mxu0 %v1446
    %1480 = vmatprep.subr.mxu0 0.0
    %1481 = vmatpush1.msra.mxu0 %v1447
    %1482 = vmatprep.subr.mxu0 0.0
    %1483 = vmatpush1.msra.mxu0 %v1448
    %1484 = vmatprep.subr.mxu0 0.0
    %1485 = vmatpush1.msra.mxu0 %v1449
    %1486 = vmatprep.subr.mxu0 0.0
    %1487 = vmatpush1.msra.mxu0 %v1450
    %1488 = vmatprep.subr.mxu0 0.0
    %1489 = vmatpush1.msra.mxu0 %v1451
    %1490 = vmatprep.subr.mxu0 0.0
    %1491 = vmatpush1.msra.mxu0 %v1452
    %1492 = vmatprep.subr.mxu0 0.0
    %1493 = vmatpush1.msra.mxu0 0.0
    %1494 = vmatprep.subr.mxu0 0.0
    %1495 = vmatpush1.msra.mxu0 0.0
    %1496 = vmatprep.subr.mxu0 0.0
    %1497 = vmatpush1.msra.mxu0 0.0
    %1498 = vmatprep.subr.mxu0 0.0
    %1499 = vmatpush1.msra.mxu0 0.0
    %1500 = vmatprep.subr.mxu0 0.0
    %1501 = vmatpush1.msra.mxu0 0.0
    %1502 = vmatprep.subr.mxu0 0.0
    %1503 = vmatpush1.msra.mxu0 0.0
    %1504 = vmatprep.subr.mxu0 0.0
    %1505 = vmatpush1.msra.mxu0 0.0
    %1506 = vmatprep.subr.mxu0 0.0
    %1507 = vmatpush1.msra.mxu0 0.0
    %1508 = vmatprep.subr.mxu0 0.0
    %1509 = vmatpush1.msra.mxu0 0.0
    %1510 = vmatprep.subr.mxu0 0.0
    %1511 = vmatpush1.msra.mxu0 0.0
    %1512 = vmatprep.subr.mxu0 0.0
    %1513 = vmatpush1.msra.mxu0 0.0
    %1514 = vmatprep.subr.mxu0 0.0
    %1515 = vmatpush1.msra.mxu0 0.0
    %1516 = vmatprep.subr.mxu0 0.0
    %1517 = vmatpush1.msra.mxu0 0.0
    %1518 = vmatprep.subr.mxu0 0.0
    %1519 = vmatpush1.msra.mxu0 0.0
    %1520 = vmatprep.subr.mxu0 0.0
    %1521 = vmatpush1.msra.mxu0 0.0
    %1522 = vmatprep.subr.mxu0 0.0
    %1523 = vmatpush1.msra.mxu0 0.0
    %1524 = vmatprep.mubr.f32.mxu0 0.0
    %1525 = vmatmul.mubr.f32.gmra.mrb[0].mxu0 %v1436
    %v1526 = vpop.f32.mrb[0].mxu0
    %v1527 = vadd.f32 %v1458, %v1526
    %v1528 = vpop.f32.mrb[0].mxu0
    %1529 = vdwg.mxu0
    %1530 = vst [vmem:[#allocation15] sm:$0xff] %v1527
    // Predicated region
    $region62: #{tpu_custom_call.1} parent=1 // pred_check
      _
    $region63: #{tpu_custom_call.1} parent=1 // pred_check_branch
      %1532 = sbr.rel (0) target = $region65
    $region64: #{tpu_custom_call.1} parent=1 // pred_region
      %s1534 = ssub.s32 128, 128
      %1535 = vsyncadd [#allocation6], %s1534
      %s1537 = sshll.u32 [#allocation15], 4
      %s1538 = int_to_ptr.vmem [resolvable:$true] %s1537
      %1540 = dma.vmem_to_hbm [thread:$0]  %s1538, 128, %s9, [#allocation6]
    $region65: #{tpu_custom_call.1} parent=1 // pred_fallthru
      _
    // Predicated region
    $region66: #{tpu_custom_call.1} parent=1 // pred_check
      _
    $region67: #{tpu_custom_call.1} parent=1 // pred_check_branch
      %1542 = sbr.rel (0) target = $region69
    $region68: #{tpu_custom_call.1} parent=1 // pred_region
      %1543 = dma.done [#allocation6], 128
    $region69: #{tpu_custom_call.1} parent=1 // pred_fallthru
      _
    %1544 = vsyncpa [#allocation5], 1
    %1545 = vsyncpa [#allocation8], 1
    %1546 = vsyncpa [#allocation11], 1
    %1547 = vsyncpa [#allocation14], 1
    %1548 = vsyncpa [#allocation6], 1

</llo_original>
